<compile_context>
chip_gen: v7x
topology: tpu7x:2x2x1
jax: 0.10.0
libtpu: 0.0.40
codegen_flags: <defaults>
</compile_context>

<pallas_src>
import functools

import jax
import jax.numpy as jnp
from jax.experimental import pallas as pl
from jax.experimental.pallas import tpu as pltpu


_NEG_BIG = -1e9  # finite "minus infinity" for masked (padded) key columns


def _clip_head_kernel(scale_ref, n_ref, h1_ref, h2_ref,
                      loss_ref, hit_ref,
                      m_sc, l_sc, tgt_sc, idx_sc,
                      *, tile, mxu_dtype, mask_pad):
    qi = pl.program_id(0)          # query-row tile   (parallel)
    ki = pl.program_id(1)          # key-column tile  (reduction, last axis)
    nk = pl.num_programs(1)

    # temperature = clamp(exp(logit_scale), max=100)
    temp = jnp.minimum(jnp.exp(scale_ref[0]), 100.0)

    # F.normalize(dim=-1): x / max(||x||, 1e-12) == x * rsqrt(max(sumsq, 1e-24))
    h1 = h1_ref[...].astype(jnp.float32)
    h2 = h2_ref[...].astype(jnp.float32)
    inv1 = jax.lax.rsqrt(jnp.maximum(jnp.sum(h1 * h1, axis=-1, keepdims=True), 1e-24))
    inv2 = jax.lax.rsqrt(jnp.maximum(jnp.sum(h2 * h2, axis=-1, keepdims=True), 1e-24))
    h1s = h1 * (inv1 * temp)       # temperature folded into the query scale
    h2n = h2 * inv2

    @pl.when(ki == 0)
    def _init():
        m_sc[...] = jnp.full_like(m_sc, -jnp.inf)
        l_sc[...] = jnp.zeros_like(l_sc)
        idx_sc[...] = jnp.zeros_like(idx_sc)

    # Target (diagonal) logits: labels == arange(N), so the target is the
    # row-wise dot of matching rows -> O(tile*C) VPU work at the ki == qi tile.
    @pl.when(ki == qi)
    def _target():
        tgt_sc[...] = jnp.sum(h1s * h2n, axis=-1, keepdims=True)

    # logits tile on the MXU, contracting the feature dim of BOTH operands
    # (no explicit transpose of h2); f32 accumulation.
    s = jax.lax.dot_general(
        h1s.astype(mxu_dtype), h2n.astype(mxu_dtype),
        dimension_numbers=(((1,), (1,)), ((), ())),
        preferred_element_type=jnp.float32)

    col_ids = jax.lax.broadcasted_iota(jnp.int32, s.shape, 1)
    if mask_pad:
        key_valid = (ki * tile + col_ids) < n_ref[0]
        s = jnp.where(key_valid, s, _NEG_BIG)

    # Online softmax: one per-tile max feeds both the LSE and the argmax.
    m_old = m_sc[...]
    t_max = jnp.max(s, axis=-1, keepdims=True)
    m_new = jnp.maximum(m_old, t_max)
    p = jnp.exp(s - m_new)
    l_sc[...] = jnp.exp(m_old - m_new) * l_sc[...] + jnp.sum(p, axis=-1, keepdims=True)
    m_sc[...] = m_new

    # Running first-index argmax (torch `logits.max(dim=1)[1]` returns the
    # first maximal index): strictly-greater keeps the earlier tile's index,
    # within a tile the min over equal-to-max columns gives the first one.
    local_first = jnp.min(jnp.where(s == t_max, col_ids, tile),
                          axis=-1, keepdims=True)
    idx_sc[...] = jnp.where(t_max > m_old, ki * tile + local_first, idx_sc[...])

    @pl.when(ki == nk - 1)
    def _finalize():
        lse = m_sc[...] + jnp.log(l_sc[...])
        row_ids = qi * tile + jax.lax.broadcasted_iota(jnp.int32, (tile, 1), 0)
        per_loss = lse - tgt_sc[...]
        hit = (idx_sc[...] == row_ids).astype(jnp.int32)
        if mask_pad:
            row_valid = row_ids < n_ref[0]
            per_loss = jnp.where(row_valid, per_loss, 0.0)
            hit = jnp.where(row_valid, hit, 0)
        loss_ref[...] = per_loss
        hit_ref[...] = hit


def clip_head_forward(h1, h2, logit_scale, *, tile=256, mxu_dtype=jnp.bfloat16):
    """CLIPHead 2D path.  h1, h2: (N, C); logit_scale: scalar / (1,) parameter.

    tile:      query == key tile size (>=256 on v6e/v7x, 128 on v5e).
    mxu_dtype: matmul operand dtype.  bf16 gives full MXU rate on v6e/v7x
               (accumulation stays f32); pass jnp.float32 for exact-f32 logits.
    """
    N, C = h1.shape
    Np = -(-N // tile) * tile
    Cp = -(-C // 128) * 128              # lane-dense feature dim / full MXU K
    needs_pad = (Np != N) or (Cp != C)
    mask_pad = Np != N                   # zero-padded C needs no masking

    h1p = jnp.pad(h1, ((0, Np - N), (0, Cp - C))) if needs_pad else h1
    h2p = jnp.pad(h2, ((0, Np - N), (0, Cp - C))) if needs_pad else h2
    scale = jnp.asarray(logit_scale, jnp.float32).reshape(1)
    n_true = jnp.array([N], jnp.int32)

    gq = Np // tile
    kernel = functools.partial(_clip_head_kernel, tile=tile,
                               mxu_dtype=mxu_dtype, mask_pad=mask_pad)

    per_loss, per_hit = pl.pallas_call(
        kernel,
        out_shape=(
            jax.ShapeDtypeStruct((Np, 1), jnp.float32),   # per-row CE term
            jax.ShapeDtypeStruct((Np, 1), jnp.int32),     # per-row hit (0/1)
        ),
        grid=(gq, gq),
        in_specs=[
            pl.BlockSpec(memory_space=pltpu.MemorySpace.SMEM),     # logit_scale
            pl.BlockSpec(memory_space=pltpu.MemorySpace.SMEM),     # true N
            pl.BlockSpec((tile, Cp), lambda qi, ki: (qi, 0)),      # h1 rows
            pl.BlockSpec((tile, Cp), lambda qi, ki: (ki, 0)),      # h2 rows
        ],
        out_specs=(
            pl.BlockSpec((tile, 1), lambda qi, ki: (qi, 0)),
            pl.BlockSpec((tile, 1), lambda qi, ki: (qi, 0)),
        ),
        scratch_shapes=[
            pltpu.VMEM((tile, 1), jnp.float32),   # running max m
            pltpu.VMEM((tile, 1), jnp.float32),   # running sum-exp l
            pltpu.VMEM((tile, 1), jnp.float32),   # target (diag) logit
            pltpu.VMEM((tile, 1), jnp.int32),     # running first-argmax column
        ],
        compiler_params=pltpu.CompilerParams(
            dimension_semantics=("parallel", "arbitrary")),
        cost_estimate=pl.CostEstimate(
            flops=2 * Np * Np * Cp,
            transcendentals=Np * Np,
            bytes_accessed=2 * Np * Cp * 4 + 2 * Np * 4),
    )(scale, n_true, h1p, h2p)

    loss = jnp.sum(per_loss) / N                 # CrossEntropy mean over true rows
    correct = jnp.sum(per_hit).astype(jnp.int32)
    return loss, correct


def clip_head_reference(h1, h2, logit_scale):
    """Pure-JAX reference of the same 2D path (for sanity checking)."""
    h1 = h1 / jnp.maximum(jnp.linalg.norm(h1, axis=-1, keepdims=True), 1e-12)
    h2 = h2 / jnp.maximum(jnp.linalg.norm(h2, axis=-1, keepdims=True), 1e-12)
    temp = jnp.minimum(jnp.exp(logit_scale[0]), 100.0)
    logits = h1 @ h2.T * temp
    N = logits.shape[0]
    labels = jnp.arange(N)
    lse = jax.scipy.special.logsumexp(logits, axis=-1)
    loss = jnp.mean(lse - logits[labels, labels])
    correct = jnp.sum(jnp.argmax(logits, axis=1) == labels).astype(jnp.int32)
    return loss, correct


if __name__ == "__main__":
    key = jax.random.PRNGKey(0)
    k1, k2 = jax.random.split(key)

    N, C = 8, 32  # small demo: batch=8 embeddings of dim 32
    h1 = jax.random.normal(k1, (N, C), dtype=jnp.float32)
    h2 = jax.random.normal(k2, (N, C), dtype=jnp.float32)
    # deterministic parameter init: logit_scale = log(1/0.07)  (CLIP default)
    logit_scale = jnp.array([jnp.log(1.0 / 0.07)], dtype=jnp.float32)

    ref_loss, ref_correct = clip_head_reference(h1, h2, logit_scale)

    # Exact-precision path (f32 MXU operands).
    loss32, correct32 = clip_head_forward(h1, h2, logit_scale,
                                          tile=128, mxu_dtype=jnp.float32)
    jax.block_until_ready((loss32, correct32))
    assert jnp.allclose(loss32, ref_loss, atol=1e-3, rtol=1e-3), (loss32, ref_loss)
    assert int(correct32) == int(ref_correct), (correct32, ref_correct)

    # Default fast path (bf16 MXU operands, f32 accumulation) — v6e/v7x rate.
    loss16, correct16 = clip_head_forward(h1, h2, logit_scale, tile=128)
    jax.block_until_ready((loss16, correct16))
    assert jnp.allclose(loss16, ref_loss, atol=1e-1, rtol=5e-2), (loss16, ref_loss)

    print("KERNEL_OK")
</pallas_src>

<mosaic_0001>
module attributes {stable_mosaic.version = 11 : i64} {
  func.func @_clip_head_kernel(%arg0: i32, %arg1: i32, %arg2: memref<1xf32, #tpu.memory_space<smem>>, %arg3: memref<1xi32, #tpu.memory_space<smem>>, %arg4: memref<128x128xf32, #tpu.memory_space<vmem>>, %arg5: memref<128x128xf32, #tpu.memory_space<vmem>>, %arg6: memref<128x1xf32, #tpu.memory_space<vmem>>, %arg7: memref<128x1xi32, #tpu.memory_space<vmem>>, %arg8: memref<128x1xf32, #tpu.memory_space<vmem>>, %arg9: memref<128x1xf32, #tpu.memory_space<vmem>>, %arg10: memref<128x1xf32, #tpu.memory_space<vmem>>, %arg11: memref<128x1xi32, #tpu.memory_space<vmem>>) attributes {dimension_semantics = [#tpu.dimension_semantics<parallel>, #tpu.dimension_semantics<arbitrary>], iteration_bounds = array<i64: 1, 1>, scalar_prefetch = 0 : i64, scratch_operands = 4 : i64, tpu.core_type = #tpu.core_type<tc>, window_params = [{transform_indices = @transform_0, window_bounds = array<i64: 1>}, {transform_indices = @transform_1, window_bounds = array<i64: 1>}, {transform_indices = @transform_2, window_bounds = array<i64: 128, 128>}, {transform_indices = @transform_3, window_bounds = array<i64: 128, 128>}, {transform_indices = @transform_4, window_bounds = array<i64: 128, 1>}, {transform_indices = @transform_5, window_bounds = array<i64: 128, 1>}]} {
    %c0 = arith.constant 0 : index
    %0 = memref.load %arg2[%c0] : memref<1xf32, #tpu.memory_space<smem>>
    %1 = math.exp %0 : f32
    %cst = arith.constant 1.000000e+02 : f32
    %2 = arith.minimumf %1, %cst : f32
    %c0_0 = arith.constant 0 : index
    %c0_1 = arith.constant 0 : index
    %3 = vector.load %arg4[%c0_0, %c0_1] : memref<128x128xf32, #tpu.memory_space<vmem>>, vector<128x128xf32>
    %c0_2 = arith.constant 0 : index
    %c0_3 = arith.constant 0 : index
    %4 = vector.load %arg5[%c0_2, %c0_3] : memref<128x128xf32, #tpu.memory_space<vmem>>, vector<128x128xf32>
    %5 = arith.mulf %3, %3 : vector<128x128xf32>
    %cst_4 = arith.constant dense<0.000000e+00> : vector<128xf32>
    %6 = vector.multi_reduction <add>, %5, %cst_4 [1] : vector<128x128xf32> to vector<128xf32>
    %7 = vector.shape_cast %6 : vector<128xf32> to vector<128x1xf32>
    %cst_5 = arith.constant 1.000000e-24 : f32
    %8 = vector.broadcast %cst_5 : f32 to vector<128x1xf32>
    %9 = arith.maximumf %7, %8 : vector<128x1xf32>
    %10 = math.rsqrt %9 : vector<128x1xf32>
    %11 = arith.mulf %4, %4 : vector<128x128xf32>
    %cst_6 = arith.constant dense<0.000000e+00> : vector<128xf32>
    %12 = vector.multi_reduction <add>, %11, %cst_6 [1] : vector<128x128xf32> to vector<128xf32>
    %13 = vector.shape_cast %12 : vector<128xf32> to vector<128x1xf32>
    %cst_7 = arith.constant 1.000000e-24 : f32
    %14 = vector.broadcast %cst_7 : f32 to vector<128x1xf32>
    %15 = arith.maximumf %13, %14 : vector<128x1xf32>
    %16 = math.rsqrt %15 : vector<128x1xf32>
    %17 = vector.broadcast %2 : f32 to vector<128x1xf32>
    %18 = arith.mulf %10, %17 : vector<128x1xf32>
    %19 = vector.broadcast %18 : vector<128x1xf32> to vector<128x128xf32>
    %20 = arith.mulf %3, %19 : vector<128x128xf32>
    %21 = vector.broadcast %16 : vector<128x1xf32> to vector<128x128xf32>
    %22 = arith.mulf %4, %21 : vector<128x128xf32>
    %c0_i32 = arith.constant 0 : i32
    %23 = arith.cmpi eq, %arg1, %c0_i32 : i32
    %24 = arith.extui %23 : i1 to i32
    %c0_i32_8 = arith.constant 0 : i32
    %25 = arith.cmpi ne, %24, %c0_i32_8 : i32
    scf.if %25 {
      %cst_32 = arith.constant 0xFF800000 : f32
      %71 = vector.broadcast %cst_32 : f32 to vector<128x1xf32>
      %c0_33 = arith.constant 0 : index
      %c0_34 = arith.constant 0 : index
      %72 = vector.load %arg8[%c0_33, %c0_34] : memref<128x1xf32, #tpu.memory_space<vmem>>, vector<128x1xf32>
      tpu.vector_store %arg8[%c0_33, %c0_34], %71 {strides = array<i32>} : memref<128x1xf32, #tpu.memory_space<vmem>>, vector<128x1xf32>,
      %cst_35 = arith.constant 0.000000e+00 : f32
      %73 = vector.broadcast %cst_35 : f32 to vector<128x1xf32>
      %c0_36 = arith.constant 0 : index
      %c0_37 = arith.constant 0 : index
      %74 = vector.load %arg9[%c0_36, %c0_37] : memref<128x1xf32, #tpu.memory_space<vmem>>, vector<128x1xf32>
      tpu.vector_store %arg9[%c0_36, %c0_37], %73 {strides = array<i32>} : memref<128x1xf32, #tpu.memory_space<vmem>>, vector<128x1xf32>,
      %c0_i32_38 = arith.constant 0 : i32
      %75 = vector.broadcast %c0_i32_38 : i32 to vector<128x1xi32>
      %c0_39 = arith.constant 0 : index
      %c0_40 = arith.constant 0 : index
      %76 = vector.load %arg11[%c0_39, %c0_40] : memref<128x1xi32, #tpu.memory_space<vmem>>, vector<128x1xi32>
      tpu.vector_store %arg11[%c0_39, %c0_40], %75 {strides = array<i32>} : memref<128x1xi32, #tpu.memory_space<vmem>>, vector<128x1xi32>,
    } else {
    }
    %26 = arith.cmpi eq, %arg1, %arg0 : i32
    %27 = arith.extui %26 : i1 to i32
    %c0_i32_9 = arith.constant 0 : i32
    %28 = arith.cmpi ne, %27, %c0_i32_9 : i32
    scf.if %28 {
      %71 = arith.mulf %20, %22 : vector<128x128xf32>
      %cst_32 = arith.constant dense<0.000000e+00> : vector<128xf32>
      %72 = vector.multi_reduction <add>, %71, %cst_32 [1] : vector<128x128xf32> to vector<128xf32>
      %73 = vector.shape_cast %72 : vector<128xf32> to vector<128x1xf32>
      %c0_33 = arith.constant 0 : index
      %c0_34 = arith.constant 0 : index
      %74 = vector.load %arg10[%c0_33, %c0_34] : memref<128x1xf32, #tpu.memory_space<vmem>>, vector<128x1xf32>
      tpu.vector_store %arg10[%c0_33, %c0_34], %73 {strides = array<i32>} : memref<128x1xf32, #tpu.memory_space<vmem>>, vector<128x1xf32>,
    } else {
    }
    %cst_10 = arith.constant dense<0.000000e+00> : vector<128x128xf32>
    %29 = tpu.matmul %20, %22, %cst_10 {dimension_numbers = #tpu.dot_dimension_numbers<[1], [1], [0], [0], [0, 0, 1, 0], [], []>} : vector<128x128xf32>, vector<128x128xf32>, vector<128x128xf32> -> vector<128x128xf32>
    %30 = tpu.iota {dimensions = array<i32: 1>} : vector<128x128xi32>
    %c128_i32 = arith.constant 128 : i32
    %31 = arith.muli %arg1, %c128_i32 : i32
    %32 = vector.broadcast %31 : i32 to vector<128x128xi32>
    %33 = arith.addi %32, %30 : vector<128x128xi32>
    %c0_11 = arith.constant 0 : index
    %34 = memref.load %arg3[%c0_11] : memref<1xi32, #tpu.memory_space<smem>>
    %35 = vector.broadcast %34 : i32 to vector<128x128xi32>
    %36 = arith.cmpi slt, %33, %35 : vector<128x128xi32>
    %cst_12 = arith.constant -1.000000e+09 : f32
    %37 = vector.broadcast %cst_12 : f32 to vector<128x128xf32>
    %38 = arith.select %36, %29, %37 : vector<128x128xi1>, vector<128x128xf32>
    %c0_13 = arith.constant 0 : index
    %c0_14 = arith.constant 0 : index
    %39 = vector.load %arg8[%c0_13, %c0_14] : memref<128x1xf32, #tpu.memory_space<vmem>>, vector<128x1xf32>
    %cst_15 = arith.constant dense<0xFF800000> : vector<128xf32>
    %40 = vector.multi_reduction <maximumf>, %38, %cst_15 [1] : vector<128x128xf32> to vector<128xf32>
    %41 = vector.shape_cast %40 : vector<128xf32> to vector<128x1xf32>
    %42 = arith.maximumf %39, %41 : vector<128x1xf32>
    %43 = vector.broadcast %42 : vector<128x1xf32> to vector<128x128xf32>
    %44 = arith.subf %38, %43 : vector<128x128xf32>
    %45 = math.exp %44 : vector<128x128xf32>
    %46 = arith.subf %39, %42 : vector<128x1xf32>
    %47 = math.exp %46 : vector<128x1xf32>
    %c0_16 = arith.constant 0 : index
    %c0_17 = arith.constant 0 : index
    %48 = vector.load %arg9[%c0_16, %c0_17] : memref<128x1xf32, #tpu.memory_space<vmem>>, vector<128x1xf32>
    %49 = arith.mulf %47, %48 : vector<128x1xf32>
    %cst_18 = arith.constant dense<0.000000e+00> : vector<128xf32>
    %50 = vector.multi_reduction <add>, %45, %cst_18 [1] : vector<128x128xf32> to vector<128xf32>
    %51 = vector.shape_cast %50 : vector<128xf32> to vector<128x1xf32>
    %52 = arith.addf %49, %51 : vector<128x1xf32>
    %c0_19 = arith.constant 0 : index
    %c0_20 = arith.constant 0 : index
    %53 = vector.load %arg9[%c0_19, %c0_20] : memref<128x1xf32, #tpu.memory_space<vmem>>, vector<128x1xf32>
    tpu.vector_store %arg9[%c0_19, %c0_20], %52 {strides = array<i32>} : memref<128x1xf32, #tpu.memory_space<vmem>>, vector<128x1xf32>,
    %c0_21 = arith.constant 0 : index
    %c0_22 = arith.constant 0 : index
    %54 = vector.load %arg8[%c0_21, %c0_22] : memref<128x1xf32, #tpu.memory_space<vmem>>, vector<128x1xf32>
    tpu.vector_store %arg8[%c0_21, %c0_22], %42 {strides = array<i32>} : memref<128x1xf32, #tpu.memory_space<vmem>>, vector<128x1xf32>,
    %55 = vector.broadcast %41 : vector<128x1xf32> to vector<128x128xf32>
    %56 = arith.cmpf oeq, %38, %55 : vector<128x128xf32>
    %c128_i32_23 = arith.constant 128 : i32
    %57 = vector.broadcast %c128_i32_23 : i32 to vector<128x128xi32>
    %58 = arith.select %56, %30, %57 : vector<128x128xi1>, vector<128x128xi32>
    %cst_24 = arith.constant dense<2147483647> : vector<128xi32>
    %59 = vector.multi_reduction <minsi>, %58, %cst_24 [1] : vector<128x128xi32> to vector<128xi32>
    %60 = vector.shape_cast %59 : vector<128xi32> to vector<128x1xi32>
    %61 = arith.cmpf ogt, %41, %39 : vector<128x1xf32>
    %c128_i32_25 = arith.constant 128 : i32
    %62 = arith.muli %arg1, %c128_i32_25 : i32
    %63 = vector.broadcast %62 : i32 to vector<128x1xi32>
    %64 = arith.addi %63, %60 : vector<128x1xi32>
    %c0_26 = arith.constant 0 : index
    %c0_27 = arith.constant 0 : index
    %65 = vector.load %arg11[%c0_26, %c0_27] : memref<128x1xi32, #tpu.memory_space<vmem>>, vector<128x1xi32>
    %66 = arith.select %61, %64, %65 : vector<128x1xi1>, vector<128x1xi32>
    %c0_28 = arith.constant 0 : index
    %c0_29 = arith.constant 0 : index
    %67 = vector.load %arg11[%c0_28, %c0_29] : memref<128x1xi32, #tpu.memory_space<vmem>>, vector<128x1xi32>
    tpu.vector_store %arg11[%c0_28, %c0_29], %66 {strides = array<i32>} : memref<128x1xi32, #tpu.memory_space<vmem>>, vector<128x1xi32>,
    %c0_i32_30 = arith.constant 0 : i32
    %68 = arith.cmpi eq, %arg1, %c0_i32_30 : i32
    %69 = arith.extui %68 : i1 to i32
    %c0_i32_31 = arith.constant 0 : i32
    %70 = arith.cmpi ne, %69, %c0_i32_31 : i32
    scf.if %70 {
      %c0_32 = arith.constant 0 : index
      %c0_33 = arith.constant 0 : index
      %71 = vector.load %arg8[%c0_32, %c0_33] : memref<128x1xf32, #tpu.memory_space<vmem>>, vector<128x1xf32>
      %c0_34 = arith.constant 0 : index
      %c0_35 = arith.constant 0 : index
      %72 = vector.load %arg9[%c0_34, %c0_35] : memref<128x1xf32, #tpu.memory_space<vmem>>, vector<128x1xf32>
      %73 = math.log %72 : vector<128x1xf32>
      %74 = arith.addf %71, %73 : vector<128x1xf32>
      %c128_i32_36 = arith.constant 128 : i32
      %75 = arith.muli %arg0, %c128_i32_36 : i32
      %76 = tpu.iota {dimensions = array<i32: 0>} : vector<128x1xi32>
      %77 = vector.broadcast %75 : i32 to vector<128x1xi32>
      %78 = arith.addi %77, %76 : vector<128x1xi32>
      %c0_37 = arith.constant 0 : index
      %c0_38 = arith.constant 0 : index
      %79 = vector.load %arg10[%c0_37, %c0_38] : memref<128x1xf32, #tpu.memory_space<vmem>>, vector<128x1xf32>
      %80 = arith.subf %74, %79 : vector<128x1xf32>
      %c0_39 = arith.constant 0 : index
      %c0_40 = arith.constant 0 : index
      %81 = vector.load %arg11[%c0_39, %c0_40] : memref<128x1xi32, #tpu.memory_space<vmem>>, vector<128x1xi32>
      %82 = arith.cmpi eq, %81, %78 : vector<128x1xi32>
      %83 = arith.extui %82 : vector<128x1xi1> to vector<128x1xi32>
      %c0_41 = arith.constant 0 : index
      %84 = memref.load %arg3[%c0_41] : memref<1xi32, #tpu.memory_space<smem>>
      %85 = vector.broadcast %84 : i32 to vector<128x1xi32>
      %86 = arith.cmpi slt, %78, %85 : vector<128x1xi32>
      %cst_42 = arith.constant 0.000000e+00 : f32
      %87 = vector.broadcast %cst_42 : f32 to vector<128x1xf32>
      %88 = arith.select %86, %80, %87 : vector<128x1xi1>, vector<128x1xf32>
      %c0_i32_43 = arith.constant 0 : i32
      %89 = vector.broadcast %c0_i32_43 : i32 to vector<128x1xi32>
      %90 = arith.select %86, %83, %89 : vector<128x1xi1>, vector<128x1xi32>
      %c0_44 = arith.constant 0 : index
      %c0_45 = arith.constant 0 : index
      %91 = vector.load %arg6[%c0_44, %c0_45] : memref<128x1xf32, #tpu.memory_space<vmem>>, vector<128x1xf32>
      tpu.vector_store %arg6[%c0_44, %c0_45], %88 {strides = array<i32>} : memref<128x1xf32, #tpu.memory_space<vmem>>, vector<128x1xf32>,
      %c0_46 = arith.constant 0 : index
      %c0_47 = arith.constant 0 : index
      %92 = vector.load %arg7[%c0_46, %c0_47] : memref<128x1xi32, #tpu.memory_space<vmem>>, vector<128x1xi32>
      tpu.vector_store %arg7[%c0_46, %c0_47], %90 {strides = array<i32>} : memref<128x1xi32, #tpu.memory_space<vmem>>, vector<128x1xi32>,
    } else {
    }
    return
  }
  func.func @transform_0(%arg0: i32, %arg1: i32) -> i32 {
    %c0_i32 = arith.constant 0 : i32
    %c0_i32_0 = arith.constant 0 : i32
    return %c0_i32 : i32
  }
  func.func @transform_1(%arg0: i32, %arg1: i32) -> i32 {
    %c0_i32 = arith.constant 0 : i32
    %c0_i32_0 = arith.constant 0 : i32
    return %c0_i32 : i32
  }
  func.func @transform_2(%arg0: i32, %arg1: i32) -> (i32, i32) {
    %c0_i32 = arith.constant 0 : i32
    %c0_i32_0 = arith.constant 0 : i32
    return %arg0, %c0_i32 : i32, i32
  }
  func.func @transform_3(%arg0: i32, %arg1: i32) -> (i32, i32) {
    %c0_i32 = arith.constant 0 : i32
    %c0_i32_0 = arith.constant 0 : i32
    return %arg1, %c0_i32 : i32, i32
  }
  func.func @transform_4(%arg0: i32, %arg1: i32) -> (i32, i32) {
    %c0_i32 = arith.constant 0 : i32
    %c0_i32_0 = arith.constant 0 : i32
    return %arg0, %c0_i32 : i32, i32
  }
  func.func @transform_5(%arg0: i32, %arg1: i32) -> (i32, i32) {
    %c0_i32 = arith.constant 0 : i32
    %c0_i32_0 = arith.constant 0 : i32
    return %arg0, %c0_i32 : i32, i32
  }
}

</mosaic_0001>

<llo_original>
// kernel: tpu_custom_call.1
$region0: #{tpu_custom_call.1}
  #allocation0 [shape = 'u32[]', space=smem, size = 0x4, offset = 0x4, fixed_abs, tag = 'smem constant byte address 0x4 - core index']
  #allocation1 [shape = 'u32[144,128]{1,0:T(1,128)}', space=vmem, size = 0x12000, scoped, tag = 'internal scratch']
  #allocation2 [shape = 'f32[128,1]{1,0:T(8,128)}', space=vmem, size = 0x10000, scoped, tag = 'scratch operand']
  #allocation3 [shape = 'f32[128,1]{1,0:T(8,128)}', space=vmem, size = 0x10000, scoped, tag = 'scratch operand']
  #allocation4 [shape = 'f32[128,1]{1,0:T(8,128)}', space=vmem, size = 0x10000, scoped, tag = 'scratch operand']
  #allocation5 [shape = 's32[128,1]{1,0:T(8,128)}', space=vmem, size = 0x10000, scoped, tag = 'scratch operand']
  #allocation6 [shape = 'f32[1]{0:T(128)S(6)}', space=smem, size = 0x200, scoped, tag = 'scoped memory for tpu_custom_call.1']
  #allocation7 [shape = 's32[1]{0:T(128)S(6)}', space=smem, size = 0x200, scoped, tag = 'scoped memory for tpu_custom_call.1']
  %s0 = inlined_call_operand.<no memory space> [shape: f32[1], index: 0, kind: input, shape index: {}]
  %s1 = inlined_call_operand.<no memory space> [shape: s32[1], index: 1, kind: input, shape index: {}]
  %s2 = inlined_call_operand.hbm [shape: f32[128,128], index: 2, kind: input, shape index: {}]
  %s3 = inlined_call_operand.hbm [shape: f32[128,128], index: 3, kind: input, shape index: {}]
  %s4 = inlined_call_operand.vmem [shape: f32[128,1], index: 4, kind: output, shape index: {0}]
  %s5 = inlined_call_operand.vmem [shape: s32[128,1], index: 5, kind: output, shape index: {1}]
  %6 = xla_tuple %s4, %s5
  %s7 = sld [smem:[#allocation0]]
  $region54: #{tpu_custom_call.1} parent=0
    _
  %s9 = ssub.s32 1, %s7
  %s10 = scalar_select 0, %s9, %s7
  %11 = sst [smem:[#allocation6]] %s0
  %12 = sst [smem:[#allocation7]] %s1
  $region1: #{tpu_custom_call.1} parent=0
    #allocation8 [shape = 'u8[65536]{0}', space=vmem, size = 0x10000, scoped, tag = 'input window, operand 2, single buffered']
    #allocation9 [shape = 's32[1]{0}', space=sflag, size = 0x4, scoped, tag = 'scoped memory for tpu_custom_call.1']
    #allocation10 [shape = 'u8[65536]{0}', space=vmem, size = 0x10000, scoped, tag = 'input window, operand 3, single buffered']
    #allocation11 [shape = 's32[1]{0}', space=sflag, size = 0x4, scoped, tag = 'scoped memory for tpu_custom_call.1']
    %13 = vsyncpa [#allocation9], 0
    %14 = vsyncpa [#allocation11], 0
    // Predicated region
    $region2: #{tpu_custom_call.1} parent=1 // pred_check
      _
    $region3: #{tpu_custom_call.1} parent=1 // pred_check_branch
      %16 = sbr.rel (0) target = $region5
    $region4: #{tpu_custom_call.1} parent=1 // pred_region
      _
    $region5: #{tpu_custom_call.1} parent=1 // pred_fallthru
      _
    // Predicated region
    $region6: #{tpu_custom_call.1} parent=1 // pred_check
      _
    $region7: #{tpu_custom_call.1} parent=1 // pred_check_branch
      %18 = sbr.rel (0) target = $region9
    $region8: #{tpu_custom_call.1} parent=1 // pred_region
      _
    $region9: #{tpu_custom_call.1} parent=1 // pred_fallthru
      _
    // Predicated region
    $region10: #{tpu_custom_call.1} parent=1 // pred_check
      _
    $region11: #{tpu_custom_call.1} parent=1 // pred_check_branch
      %20 = sbr.rel (0) target = $region13
    $region12: #{tpu_custom_call.1} parent=1 // pred_region
      %s22 = ssub.s32 2048, 2048
      %23 = vsyncadd [#allocation9], %s22
      %s24 = sshll.u32 [#allocation8], 4
      %s25 = int_to_ptr.vmem [resolvable:$true] %s24
      %30 = dma.hbm_to_vmem [thread:$0]  %s2, 2048, %s25, [#allocation9], 128, 128, 8
    $region13: #{tpu_custom_call.1} parent=1 // pred_fallthru
      _
    // Predicated region
    $region14: #{tpu_custom_call.1} parent=1 // pred_check
      _
    $region15: #{tpu_custom_call.1} parent=1 // pred_check_branch
      %32 = sbr.rel (0) target = $region17
    $region16: #{tpu_custom_call.1} parent=1 // pred_region
      %s34 = ssub.s32 2048, 2048
      %35 = vsyncadd [#allocation11], %s34
      %s36 = sshll.u32 [#allocation10], 4
      %s37 = int_to_ptr.vmem [resolvable:$true] %s36
      %42 = dma.hbm_to_vmem [thread:$0]  %s3, 2048, %s37, [#allocation11], 128, 128, 8
    $region17: #{tpu_custom_call.1} parent=1 // pred_fallthru
      _
    // Predicated region
    $region18: #{tpu_custom_call.1} parent=1 // pred_check
      _
    $region19: #{tpu_custom_call.1} parent=1 // pred_check_branch
      %44 = sbr.rel (0) target = $region21
    $region20: #{tpu_custom_call.1} parent=1 // pred_region
      %45 = dma.done [#allocation9], 2048
    $region21: #{tpu_custom_call.1} parent=1 // pred_fallthru
      _
    // Predicated region
    $region22: #{tpu_custom_call.1} parent=1 // pred_check
      _
    $region23: #{tpu_custom_call.1} parent=1 // pred_check_branch
      %47 = sbr.rel (0) target = $region25
    $region24: #{tpu_custom_call.1} parent=1 // pred_region
      %48 = dma.done [#allocation11], 2048
    $region25: #{tpu_custom_call.1} parent=1 // pred_fallthru
      _
    %s49 = sld [smem:[#allocation6]]
    %v50 = vstv %s49
    %v51 = vmul.f32 %v50, 1.442695
    %v52 = vpow.pop %v51
    %s53 = vtos %v52
    %s54 = smin.f32 %s53, 100.0
    %v55 = vld [vmem:[#allocation8] sm:$0xff]
    %v56 = vld [vmem:[#allocation8 + $0x8] sm:$0xff]
    %v57 = vld [vmem:[#allocation8 + $0x10] sm:$0xff]
    %v58 = vld [vmem:[#allocation8 + $0x18] sm:$0xff]
    %v59 = vld [vmem:[#allocation8 + $0x20] sm:$0xff]
    %v60 = vld [vmem:[#allocation8 + $0x28] sm:$0xff]
    %v61 = vld [vmem:[#allocation8 + $0x30] sm:$0xff]
    %v62 = vld [vmem:[#allocation8 + $0x38] sm:$0xff]
    %v63 = vld [vmem:[#allocation8 + $0x40] sm:$0xff]
    %v64 = vld [vmem:[#allocation8 + $0x48] sm:$0xff]
    %v65 = vld [vmem:[#allocation8 + $0x50] sm:$0xff]
    %v66 = vld [vmem:[#allocation8 + $0x58] sm:$0xff]
    %v67 = vld [vmem:[#allocation8 + $0x60] sm:$0xff]
    %v68 = vld [vmem:[#allocation8 + $0x68] sm:$0xff]
    %v69 = vld [vmem:[#allocation8 + $0x70] sm:$0xff]
    %v70 = vld [vmem:[#allocation8 + $0x78] sm:$0xff]
    %v71 = vld [vmem:[#allocation10] sm:$0xff]
    %v72 = vld [vmem:[#allocation10 + $0x8] sm:$0xff]
    %v73 = vld [vmem:[#allocation10 + $0x10] sm:$0xff]
    %v74 = vld [vmem:[#allocation10 + $0x18] sm:$0xff]
    %v75 = vld [vmem:[#allocation10 + $0x20] sm:$0xff]
    %v76 = vld [vmem:[#allocation10 + $0x28] sm:$0xff]
    %v77 = vld [vmem:[#allocation10 + $0x30] sm:$0xff]
    %v78 = vld [vmem:[#allocation10 + $0x38] sm:$0xff]
    %v79 = vld [vmem:[#allocation10 + $0x40] sm:$0xff]
    %v80 = vld [vmem:[#allocation10 + $0x48] sm:$0xff]
    %v81 = vld [vmem:[#allocation10 + $0x50] sm:$0xff]
    %v82 = vld [vmem:[#allocation10 + $0x58] sm:$0xff]
    %v83 = vld [vmem:[#allocation10 + $0x60] sm:$0xff]
    %v84 = vld [vmem:[#allocation10 + $0x68] sm:$0xff]
    %v85 = vld [vmem:[#allocation10 + $0x70] sm:$0xff]
    %v86 = vld [vmem:[#allocation10 + $0x78] sm:$0xff]
    %v87 = vmul.f32 %v55, %v55
    %v88 = vmul.f32 %v56, %v56
    %v89 = vmul.f32 %v57, %v57
    %v90 = vmul.f32 %v58, %v58
    %v91 = vmul.f32 %v59, %v59
    %v92 = vmul.f32 %v60, %v60
    %v93 = vmul.f32 %v61, %v61
    %v94 = vmul.f32 %v62, %v62
    %v95 = vmul.f32 %v63, %v63
    %v96 = vmul.f32 %v64, %v64
    %v97 = vmul.f32 %v65, %v65
    %v98 = vmul.f32 %v66, %v66
    %v99 = vmul.f32 %v67, %v67
    %v100 = vmul.f32 %v68, %v68
    %v101 = vmul.f32 %v69, %v69
    %v102 = vmul.f32 %v70, %v70
    %103 = vadd.xlane.f32.xlu0 %v87
    %v104 = vpop.xlane.xlu0 %103
    %105 = vadd.xlane.f32.xlu0 %v88
    %v106 = vpop.xlane.xlu0 %105
    %107 = vadd.xlane.f32.xlu0 %v89
    %v108 = vpop.xlane.xlu0 %107
    %109 = vadd.xlane.f32.xlu0 %v90
    %v110 = vpop.xlane.xlu0 %109
    %111 = vadd.xlane.f32.xlu0 %v91
    %v112 = vpop.xlane.xlu0 %111
    %113 = vadd.xlane.f32.xlu0 %v92
    %v114 = vpop.xlane.xlu0 %113
    %115 = vadd.xlane.f32.xlu0 %v93
    %v116 = vpop.xlane.xlu0 %115
    %117 = vadd.xlane.f32.xlu0 %v94
    %v118 = vpop.xlane.xlu0 %117
    %119 = vadd.xlane.f32.xlu0 %v95
    %v120 = vpop.xlane.xlu0 %119
    %121 = vadd.xlane.f32.xlu0 %v96
    %v122 = vpop.xlane.xlu0 %121
    %123 = vadd.xlane.f32.xlu0 %v97
    %v124 = vpop.xlane.xlu0 %123
    %125 = vadd.xlane.f32.xlu0 %v98
    %v126 = vpop.xlane.xlu0 %125
    %127 = vadd.xlane.f32.xlu0 %v99
    %v128 = vpop.xlane.xlu0 %127
    %129 = vadd.xlane.f32.xlu0 %v100
    %v130 = vpop.xlane.xlu0 %129
    %131 = vadd.xlane.f32.xlu0 %v101
    %v132 = vpop.xlane.xlu0 %131
    %133 = vadd.xlane.f32.xlu0 %v102
    %v134 = vpop.xlane.xlu0 %133
    %v135 = vmax.f32 %v104, 1e-24
    %v136 = vmax.f32 %v106, 1e-24
    %v137 = vmax.f32 %v108, 1e-24
    %v138 = vmax.f32 %v110, 1e-24
    %v139 = vmax.f32 %v112, 1e-24
    %v140 = vmax.f32 %v114, 1e-24
    %v141 = vmax.f32 %v116, 1e-24
    %v142 = vmax.f32 %v118, 1e-24
    %v143 = vmax.f32 %v120, 1e-24
    %v144 = vmax.f32 %v122, 1e-24
    %v145 = vmax.f32 %v124, 1e-24
    %v146 = vmax.f32 %v126, 1e-24
    %v147 = vmax.f32 %v128, 1e-24
    %v148 = vmax.f32 %v130, 1e-24
    %v149 = vmax.f32 %v132, 1e-24
    %v150 = vmax.f32 %v134, 1e-24
    %v151 = vrsqrt.pop %v135
    %v152 = vrsqrt.pop %v136
    %v153 = vrsqrt.pop %v137
    %v154 = vrsqrt.pop %v138
    %v155 = vrsqrt.pop %v139
    %v156 = vrsqrt.pop %v140
    %v157 = vrsqrt.pop %v141
    %v158 = vrsqrt.pop %v142
    %v159 = vrsqrt.pop %v143
    %v160 = vrsqrt.pop %v144
    %v161 = vrsqrt.pop %v145
    %v162 = vrsqrt.pop %v146
    %v163 = vrsqrt.pop %v147
    %v164 = vrsqrt.pop %v148
    %v165 = vrsqrt.pop %v149
    %v166 = vrsqrt.pop %v150
    %v167 = vmul.f32 %v71, %v71
    %v168 = vmul.f32 %v72, %v72
    %v169 = vmul.f32 %v73, %v73
    %v170 = vmul.f32 %v74, %v74
    %v171 = vmul.f32 %v75, %v75
    %v172 = vmul.f32 %v76, %v76
    %v173 = vmul.f32 %v77, %v77
    %v174 = vmul.f32 %v78, %v78
    %v175 = vmul.f32 %v79, %v79
    %v176 = vmul.f32 %v80, %v80
    %v177 = vmul.f32 %v81, %v81
    %v178 = vmul.f32 %v82, %v82
    %v179 = vmul.f32 %v83, %v83
    %v180 = vmul.f32 %v84, %v84
    %v181 = vmul.f32 %v85, %v85
    %v182 = vmul.f32 %v86, %v86
    %183 = vadd.xlane.f32.xlu0 %v167
    %v184 = vpop.xlane.xlu0 %183
    %185 = vadd.xlane.f32.xlu0 %v168
    %v186 = vpop.xlane.xlu0 %185
    %187 = vadd.xlane.f32.xlu0 %v169
    %v188 = vpop.xlane.xlu0 %187
    %189 = vadd.xlane.f32.xlu0 %v170
    %v190 = vpop.xlane.xlu0 %189
    %191 = vadd.xlane.f32.xlu0 %v171
    %v192 = vpop.xlane.xlu0 %191
    %193 = vadd.xlane.f32.xlu0 %v172
    %v194 = vpop.xlane.xlu0 %193
    %195 = vadd.xlane.f32.xlu0 %v173
    %v196 = vpop.xlane.xlu0 %195
    %197 = vadd.xlane.f32.xlu0 %v174
    %v198 = vpop.xlane.xlu0 %197
    %199 = vadd.xlane.f32.xlu0 %v175
    %v200 = vpop.xlane.xlu0 %199
    %201 = vadd.xlane.f32.xlu0 %v176
    %v202 = vpop.xlane.xlu0 %201
    %203 = vadd.xlane.f32.xlu0 %v177
    %v204 = vpop.xlane.xlu0 %203
    %205 = vadd.xlane.f32.xlu0 %v178
    %v206 = vpop.xlane.xlu0 %205
    %207 = vadd.xlane.f32.xlu0 %v179
    %v208 = vpop.xlane.xlu0 %207
    %209 = vadd.xlane.f32.xlu0 %v180
    %v210 = vpop.xlane.xlu0 %209
    %211 = vadd.xlane.f32.xlu0 %v181
    %v212 = vpop.xlane.xlu0 %211
    %213 = vadd.xlane.f32.xlu0 %v182
    %v214 = vpop.xlane.xlu0 %213
    %v215 = vmax.f32 %v184, 1e-24
    %v216 = vmax.f32 %v186, 1e-24
    %v217 = vmax.f32 %v188, 1e-24
    %v218 = vmax.f32 %v190, 1e-24
    %v219 = vmax.f32 %v192, 1e-24
    %v220 = vmax.f32 %v194, 1e-24
    %v221 = vmax.f32 %v196, 1e-24
    %v222 = vmax.f32 %v198, 1e-24
    %v223 = vmax.f32 %v200, 1e-24
    %v224 = vmax.f32 %v202, 1e-24
    %v225 = vmax.f32 %v204, 1e-24
    %v226 = vmax.f32 %v206, 1e-24
    %v227 = vmax.f32 %v208, 1e-24
    %v228 = vmax.f32 %v210, 1e-24
    %v229 = vmax.f32 %v212, 1e-24
    %v230 = vmax.f32 %v214, 1e-24
    %v231 = vrsqrt.pop %v215
    %v232 = vrsqrt.pop %v216
    %v233 = vrsqrt.pop %v217
    %v234 = vrsqrt.pop %v218
    %v235 = vrsqrt.pop %v219
    %v236 = vrsqrt.pop %v220
    %v237 = vrsqrt.pop %v221
    %v238 = vrsqrt.pop %v222
    %v239 = vrsqrt.pop %v223
    %v240 = vrsqrt.pop %v224
    %v241 = vrsqrt.pop %v225
    %v242 = vrsqrt.pop %v226
    %v243 = vrsqrt.pop %v227
    %v244 = vrsqrt.pop %v228
    %v245 = vrsqrt.pop %v229
    %v246 = vrsqrt.pop %v230
    %v247 = vstv %s54
    %v248 = vmul.f32 %v151, %v247
    %v249 = vmul.f32 %v152, %v247
    %v250 = vmul.f32 %v153, %v247
    %v251 = vmul.f32 %v154, %v247
    %v252 = vmul.f32 %v155, %v247
    %v253 = vmul.f32 %v156, %v247
    %v254 = vmul.f32 %v157, %v247
    %v255 = vmul.f32 %v158, %v247
    %v256 = vmul.f32 %v159, %v247
    %v257 = vmul.f32 %v160, %v247
    %v258 = vmul.f32 %v161, %v247
    %v259 = vmul.f32 %v162, %v247
    %v260 = vmul.f32 %v163, %v247
    %v261 = vmul.f32 %v164, %v247
    %v262 = vmul.f32 %v165, %v247
    %v263 = vmul.f32 %v166, %v247
    %v264 = vmul.f32 %v55, %v248
    %v265 = vmul.f32 %v56, %v249
    %v266 = vmul.f32 %v57, %v250
    %v267 = vmul.f32 %v58, %v251
    %v268 = vmul.f32 %v59, %v252
    %v269 = vmul.f32 %v60, %v253
    %v270 = vmul.f32 %v61, %v254
    %v271 = vmul.f32 %v62, %v255
    %v272 = vmul.f32 %v63, %v256
    %v273 = vmul.f32 %v64, %v257
    %v274 = vmul.f32 %v65, %v258
    %v275 = vmul.f32 %v66, %v259
    %v276 = vmul.f32 %v67, %v260
    %v277 = vmul.f32 %v68, %v261
    %v278 = vmul.f32 %v69, %v262
    %v279 = vmul.f32 %v70, %v263
    %v280 = vmul.f32 %v71, %v231
    %v281 = vmul.f32 %v72, %v232
    %v282 = vmul.f32 %v73, %v233
    %v283 = vmul.f32 %v74, %v234
    %v284 = vmul.f32 %v75, %v235
    %v285 = vmul.f32 %v76, %v236
    %v286 = vmul.f32 %v77, %v237
    %v287 = vmul.f32 %v78, %v238
    %v288 = vmul.f32 %v79, %v239
    %v289 = vmul.f32 %v80, %v240
    %v290 = vmul.f32 %v81, %v241
    %v291 = vmul.f32 %v82, %v242
    %v292 = vmul.f32 %v83, %v243
    %v293 = vmul.f32 %v84, %v244
    %v294 = vmul.f32 %v85, %v245
    %v295 = vmul.f32 %v86, %v246
    %p296 = scmp.eq.s32.totalorder 0, 0
    // Predicated region
    $region26: #{tpu_custom_call.1} parent=1 // pred_check
      %p297 = pneg %p296
    $region27: #{tpu_custom_call.1} parent=1 // pred_check_branch
      %299 = sbr.rel (%p297) target = $region29
    $region28: #{tpu_custom_call.1} parent=1 // pred_region
      %vm300 = vcmask 7168
      %301 = vst.msk [vmem:[#allocation2] sm:$0xff] %vm300, -inf
      %302 = vst.msk [vmem:[#allocation2 + $0x8] sm:$0xff] %vm300, -inf
      %303 = vst.msk [vmem:[#allocation2 + $0x10] sm:$0xff] %vm300, -inf
      %304 = vst.msk [vmem:[#allocation2 + $0x18] sm:$0xff] %vm300, -inf
      %305 = vst.msk [vmem:[#allocation2 + $0x20] sm:$0xff] %vm300, -inf
      %306 = vst.msk [vmem:[#allocation2 + $0x28] sm:$0xff] %vm300, -inf
      %307 = vst.msk [vmem:[#allocation2 + $0x30] sm:$0xff] %vm300, -inf
      %308 = vst.msk [vmem:[#allocation2 + $0x38] sm:$0xff] %vm300, -inf
      %309 = vst.msk [vmem:[#allocation2 + $0x40] sm:$0xff] %vm300, -inf
      %310 = vst.msk [vmem:[#allocation2 + $0x48] sm:$0xff] %vm300, -inf
      %311 = vst.msk [vmem:[#allocation2 + $0x50] sm:$0xff] %vm300, -inf
      %312 = vst.msk [vmem:[#allocation2 + $0x58] sm:$0xff] %vm300, -inf
      %313 = vst.msk [vmem:[#allocation2 + $0x60] sm:$0xff] %vm300, -inf
      %314 = vst.msk [vmem:[#allocation2 + $0x68] sm:$0xff] %vm300, -inf
      %315 = vst.msk [vmem:[#allocation2 + $0x70] sm:$0xff] %vm300, -inf
      %316 = vst.msk [vmem:[#allocation2 + $0x78] sm:$0xff] %vm300, -inf
      %317 = vst.msk [vmem:[#allocation3] sm:$0xff] %vm300, 0.0
      %318 = vst.msk [vmem:[#allocation3 + $0x8] sm:$0xff] %vm300, 0.0
      %319 = vst.msk [vmem:[#allocation3 + $0x10] sm:$0xff] %vm300, 0.0
      %320 = vst.msk [vmem:[#allocation3 + $0x18] sm:$0xff] %vm300, 0.0
      %321 = vst.msk [vmem:[#allocation3 + $0x20] sm:$0xff] %vm300, 0.0
      %322 = vst.msk [vmem:[#allocation3 + $0x28] sm:$0xff] %vm300, 0.0
      %323 = vst.msk [vmem:[#allocation3 + $0x30] sm:$0xff] %vm300, 0.0
      %324 = vst.msk [vmem:[#allocation3 + $0x38] sm:$0xff] %vm300, 0.0
      %325 = vst.msk [vmem:[#allocation3 + $0x40] sm:$0xff] %vm300, 0.0
      %326 = vst.msk [vmem:[#allocation3 + $0x48] sm:$0xff] %vm300, 0.0
      %327 = vst.msk [vmem:[#allocation3 + $0x50] sm:$0xff] %vm300, 0.0
      %328 = vst.msk [vmem:[#allocation3 + $0x58] sm:$0xff] %vm300, 0.0
      %329 = vst.msk [vmem:[#allocation3 + $0x60] sm:$0xff] %vm300, 0.0
      %330 = vst.msk [vmem:[#allocation3 + $0x68] sm:$0xff] %vm300, 0.0
      %331 = vst.msk [vmem:[#allocation3 + $0x70] sm:$0xff] %vm300, 0.0
      %332 = vst.msk [vmem:[#allocation3 + $0x78] sm:$0xff] %vm300, 0.0
      %333 = vst.msk [vmem:[#allocation5] sm:$0xff] %vm300, 0
      %334 = vst.msk [vmem:[#allocation5 + $0x8] sm:$0xff] %vm300, 0
      %335 = vst.msk [vmem:[#allocation5 + $0x10] sm:$0xff] %vm300, 0
      %336 = vst.msk [vmem:[#allocation5 + $0x18] sm:$0xff] %vm300, 0
      %337 = vst.msk [vmem:[#allocation5 + $0x20] sm:$0xff] %vm300, 0
      %338 = vst.msk [vmem:[#allocation5 + $0x28] sm:$0xff] %vm300, 0
      %339 = vst.msk [vmem:[#allocation5 + $0x30] sm:$0xff] %vm300, 0
      %340 = vst.msk [vmem:[#allocation5 + $0x38] sm:$0xff] %vm300, 0
      %341 = vst.msk [vmem:[#allocation5 + $0x40] sm:$0xff] %vm300, 0
      %342 = vst.msk [vmem:[#allocation5 + $0x48] sm:$0xff] %vm300, 0
      %343 = vst.msk [vmem:[#allocation5 + $0x50] sm:$0xff] %vm300, 0
      %344 = vst.msk [vmem:[#allocation5 + $0x58] sm:$0xff] %vm300, 0
      %345 = vst.msk [vmem:[#allocation5 + $0x60] sm:$0xff] %vm300, 0
      %346 = vst.msk [vmem:[#allocation5 + $0x68] sm:$0xff] %vm300, 0
      %347 = vst.msk [vmem:[#allocation5 + $0x70] sm:$0xff] %vm300, 0
      %348 = vst.msk [vmem:[#allocation5 + $0x78] sm:$0xff] %vm300, 0
    $region29: #{tpu_custom_call.1} parent=1 // pred_fallthru
      _
    %p349 = scmp.eq.s32.totalorder 0, 0
    // Predicated region
    $region30: #{tpu_custom_call.1} parent=1 // pred_check
      %p350 = pneg %p349
    $region31: #{tpu_custom_call.1} parent=1 // pred_check_branch
      %352 = sbr.rel (%p350) target = $region33
    $region32: #{tpu_custom_call.1} parent=1 // pred_region
      %v353 = vmul.f32 %v264, %v280
      %v354 = vmul.f32 %v265, %v281
      %v355 = vmul.f32 %v266, %v282
      %v356 = vmul.f32 %v267, %v283
      %v357 = vmul.f32 %v268, %v284
      %v358 = vmul.f32 %v269, %v285
      %v359 = vmul.f32 %v270, %v286
      %v360 = vmul.f32 %v271, %v287
      %v361 = vmul.f32 %v272, %v288
      %v362 = vmul.f32 %v273, %v289
      %v363 = vmul.f32 %v274, %v290
      %v364 = vmul.f32 %v275, %v291
      %v365 = vmul.f32 %v276, %v292
      %v366 = vmul.f32 %v277, %v293
      %v367 = vmul.f32 %v278, %v294
      %v368 = vmul.f32 %v279, %v295
      %369 = vadd.xlane.f32.xlu0 %v353
      %v370 = vpop.xlane.xlu0 %369
      %371 = vadd.xlane.f32.xlu0 %v354
      %v372 = vpop.xlane.xlu0 %371
      %373 = vadd.xlane.f32.xlu0 %v355
      %v374 = vpop.xlane.xlu0 %373
      %375 = vadd.xlane.f32.xlu0 %v356
      %v376 = vpop.xlane.xlu0 %375
      %377 = vadd.xlane.f32.xlu0 %v357
      %v378 = vpop.xlane.xlu0 %377
      %379 = vadd.xlane.f32.xlu0 %v358
      %v380 = vpop.xlane.xlu0 %379
      %381 = vadd.xlane.f32.xlu0 %v359
      %v382 = vpop.xlane.xlu0 %381
      %383 = vadd.xlane.f32.xlu0 %v360
      %v384 = vpop.xlane.xlu0 %383
      %385 = vadd.xlane.f32.xlu0 %v361
      %v386 = vpop.xlane.xlu0 %385
      %387 = vadd.xlane.f32.xlu0 %v362
      %v388 = vpop.xlane.xlu0 %387
      %389 = vadd.xlane.f32.xlu0 %v363
      %v390 = vpop.xlane.xlu0 %389
      %391 = vadd.xlane.f32.xlu0 %v364
      %v392 = vpop.xlane.xlu0 %391
      %393 = vadd.xlane.f32.xlu0 %v365
      %v394 = vpop.xlane.xlu0 %393
      %395 = vadd.xlane.f32.xlu0 %v366
      %v396 = vpop.xlane.xlu0 %395
      %397 = vadd.xlane.f32.xlu0 %v367
      %v398 = vpop.xlane.xlu0 %397
      %399 = vadd.xlane.f32.xlu0 %v368
      %v400 = vpop.xlane.xlu0 %399
      %vm401 = vcmask 7168
      %402 = vst.msk [vmem:[#allocation4] sm:$0xff] %vm401, %v370
      %403 = vst.msk [vmem:[#allocation4 + $0x8] sm:$0xff] %vm401, %v372
      %404 = vst.msk [vmem:[#allocation4 + $0x10] sm:$0xff] %vm401, %v374
      %405 = vst.msk [vmem:[#allocation4 + $0x18] sm:$0xff] %vm401, %v376
      %406 = vst.msk [vmem:[#allocation4 + $0x20] sm:$0xff] %vm401, %v378
      %407 = vst.msk [vmem:[#allocation4 + $0x28] sm:$0xff] %vm401, %v380
      %408 = vst.msk [vmem:[#allocation4 + $0x30] sm:$0xff] %vm401, %v382
      %409 = vst.msk [vmem:[#allocation4 + $0x38] sm:$0xff] %vm401, %v384
      %410 = vst.msk [vmem:[#allocation4 + $0x40] sm:$0xff] %vm401, %v386
      %411 = vst.msk [vmem:[#allocation4 + $0x48] sm:$0xff] %vm401, %v388
      %412 = vst.msk [vmem:[#allocation4 + $0x50] sm:$0xff] %vm401, %v390
      %413 = vst.msk [vmem:[#allocation4 + $0x58] sm:$0xff] %vm401, %v392
      %414 = vst.msk [vmem:[#allocation4 + $0x60] sm:$0xff] %vm401, %v394
      %415 = vst.msk [vmem:[#allocation4 + $0x68] sm:$0xff] %vm401, %v396
      %416 = vst.msk [vmem:[#allocation4 + $0x70] sm:$0xff] %vm401, %v398
      %417 = vst.msk [vmem:[#allocation4 + $0x78] sm:$0xff] %vm401, %v400
    $region33: #{tpu_custom_call.1} parent=1 // pred_fallthru
      _
    %418 = vmatprep.subr.mxu0 0.0
    %419 = vmatpush1.xpose.msra.mxu0 %v280
    %420 = vmatprep.subr.mxu0 0.0
    %421 = vmatpush1.xpose.msra.mxu0 %v281
    %422 = vmatprep.subr.mxu0 0.0
    %423 = vmatpush1.xpose.msra.mxu0 %v282
    %424 = vmatprep.subr.mxu0 0.0
    %425 = vmatpush1.xpose.msra.mxu0 %v283
    %426 = vmatprep.subr.mxu0 0.0
    %427 = vmatpush1.xpose.msra.mxu0 %v284
    %428 = vmatprep.subr.mxu0 0.0
    %429 = vmatpush1.xpose.msra.mxu0 %v285
    %430 = vmatprep.subr.mxu0 0.0
    %431 = vmatpush1.xpose.msra.mxu0 %v286
    %432 = vmatprep.subr.mxu0 0.0
    %433 = vmatpush1.xpose.msra.mxu0 %v287
    %434 = vmatprep.subr.mxu0 0.0
    %435 = vmatpush1.xpose.msra.mxu0 %v288
    %436 = vmatprep.subr.mxu0 0.0
    %437 = vmatpush1.xpose.msra.mxu0 %v289
    %438 = vmatprep.subr.mxu0 0.0
    %439 = vmatpush1.xpose.msra.mxu0 %v290
    %440 = vmatprep.subr.mxu0 0.0
    %441 = vmatpush1.xpose.msra.mxu0 %v291
    %442 = vmatprep.subr.mxu0 0.0
    %443 = vmatpush1.xpose.msra.mxu0 %v292
    %444 = vmatprep.subr.mxu0 0.0
    %445 = vmatpush1.xpose.msra.mxu0 %v293
    %446 = vmatprep.subr.mxu0 0.0
    %447 = vmatpush1.xpose.msra.mxu0 %v294
    %448 = vmatprep.subr.mxu0 0.0
    %449 = vmatpush1.xpose.msra.mxu0 %v295
    %450 = vmatprep.subr.mxu0 0.0
    %451 = vmatpush1.xpose.msra.mxu0 0.0
    %452 = vmatprep.subr.mxu0 0.0
    %453 = vmatpush1.xpose.msra.mxu0 0.0
    %454 = vmatprep.subr.mxu0 0.0
    %455 = vmatpush1.xpose.msra.mxu0 0.0
    %456 = vmatprep.subr.mxu0 0.0
    %457 = vmatpush1.xpose.msra.mxu0 0.0
    %458 = vmatprep.subr.mxu0 0.0
    %459 = vmatpush1.xpose.msra.mxu0 0.0
    %460 = vmatprep.subr.mxu0 0.0
    %461 = vmatpush1.xpose.msra.mxu0 0.0
    %462 = vmatprep.subr.mxu0 0.0
    %463 = vmatpush1.xpose.msra.mxu0 0.0
    %464 = vmatprep.subr.mxu0 0.0
    %465 = vmatpush1.xpose.msra.mxu0 0.0
    %466 = vmatprep.subr.mxu0 0.0
    %467 = vmatpush1.xpose.msra.mxu0 0.0
    %468 = vmatprep.subr.mxu0 0.0
    %469 = vmatpush1.xpose.msra.mxu0 0.0
    %470 = vmatprep.subr.mxu0 0.0
    %471 = vmatpush1.xpose.msra.mxu0 0.0
    %472 = vmatprep.subr.mxu0 0.0
    %473 = vmatpush1.xpose.msra.mxu0 0.0
    %474 = vmatprep.subr.mxu0 0.0
    %475 = vmatpush1.xpose.msra.mxu0 0.0
    %476 = vmatprep.subr.mxu0 0.0
    %477 = vmatpush1.xpose.msra.mxu0 0.0
    %478 = vmatprep.subr.mxu0 0.0
    %479 = vmatpush1.xpose.msra.mxu0 0.0
    %480 = vmatprep.subr.mxu0 0.0
    %481 = vmatpush1.xpose.msra.mxu0 0.0
    %482 = vmatprep.mubr.f32.mxu0 0.0
    %483 = vmatmul.mubr.f32.gmra.mrb[0].mxu0 %v264
    %v484 = vpop.f32.mrb[0].mxu0
    %v485 = vadd.f32 0.0, %v484
    %v486 = vpop.f32.mrb[0].mxu0
    %487 = vmatprep.mubr.f32.mxu0 0.0
    %488 = vmatmul.mubr.f32.gmra.mrb[0].mxu0 %v265
    %v489 = vpop.f32.mrb[0].mxu0
    %v490 = vadd.f32 0.0, %v489
    %v491 = vpop.f32.mrb[0].mxu0
    %492 = vmatprep.mubr.f32.mxu0 0.0
    %493 = vmatmul.mubr.f32.gmra.mrb[0].mxu0 %v266
    %v494 = vpop.f32.mrb[0].mxu0
    %v495 = vadd.f32 0.0, %v494
    %v496 = vpop.f32.mrb[0].mxu0
    %497 = vmatprep.mubr.f32.mxu0 0.0
    %498 = vmatmul.mubr.f32.gmra.mrb[0].mxu0 %v267
    %v499 = vpop.f32.mrb[0].mxu0
    %v500 = vadd.f32 0.0, %v499
    %v501 = vpop.f32.mrb[0].mxu0
    %502 = vmatprep.mubr.f32.mxu0 0.0
    %503 = vmatmul.mubr.f32.gmra.mrb[0].mxu0 %v268
    %v504 = vpop.f32.mrb[0].mxu0
    %v505 = vadd.f32 0.0, %v504
    %v506 = vpop.f32.mrb[0].mxu0
    %507 = vmatprep.mubr.f32.mxu0 0.0
    %508 = vmatmul.mubr.f32.gmra.mrb[0].mxu0 %v269
    %v509 = vpop.f32.mrb[0].mxu0
    %v510 = vadd.f32 0.0, %v509
    %v511 = vpop.f32.mrb[0].mxu0
    %512 = vmatprep.mubr.f32.mxu0 0.0
    %513 = vmatmul.mubr.f32.gmra.mrb[0].mxu0 %v270
    %v514 = vpop.f32.mrb[0].mxu0
    %v515 = vadd.f32 0.0, %v514
    %v516 = vpop.f32.mrb[0].mxu0
    %517 = vmatprep.mubr.f32.mxu0 0.0
    %518 = vmatmul.mubr.f32.gmra.mrb[0].mxu0 %v271
    %v519 = vpop.f32.mrb[0].mxu0
    %v520 = vadd.f32 0.0, %v519
    %v521 = vpop.f32.mrb[0].mxu0
    %522 = vmatprep.mubr.f32.mxu0 0.0
    %523 = vmatmul.mubr.f32.gmra.mrb[0].mxu0 %v272
    %v524 = vpop.f32.mrb[0].mxu0
    %v525 = vadd.f32 0.0, %v524
    %v526 = vpop.f32.mrb[0].mxu0
    %527 = vmatprep.mubr.f32.mxu0 0.0
    %528 = vmatmul.mubr.f32.gmra.mrb[0].mxu0 %v273
    %v529 = vpop.f32.mrb[0].mxu0
    %v530 = vadd.f32 0.0, %v529
    %v531 = vpop.f32.mrb[0].mxu0
    %532 = vmatprep.mubr.f32.mxu0 0.0
    %533 = vmatmul.mubr.f32.gmra.mrb[0].mxu0 %v274
    %v534 = vpop.f32.mrb[0].mxu0
    %v535 = vadd.f32 0.0, %v534
    %v536 = vpop.f32.mrb[0].mxu0
    %537 = vmatprep.mubr.f32.mxu0 0.0
    %538 = vmatmul.mubr.f32.gmra.mrb[0].mxu0 %v275
    %v539 = vpop.f32.mrb[0].mxu0
    %v540 = vadd.f32 0.0, %v539
    %v541 = vpop.f32.mrb[0].mxu0
    %542 = vmatprep.mubr.f32.mxu0 0.0
    %543 = vmatmul.mubr.f32.gmra.mrb[0].mxu0 %v276
    %v544 = vpop.f32.mrb[0].mxu0
    %v545 = vadd.f32 0.0, %v544
    %v546 = vpop.f32.mrb[0].mxu0
    %547 = vmatprep.mubr.f32.mxu0 0.0
    %548 = vmatmul.mubr.f32.gmra.mrb[0].mxu0 %v277
    %v549 = vpop.f32.mrb[0].mxu0
    %v550 = vadd.f32 0.0, %v549
    %v551 = vpop.f32.mrb[0].mxu0
    %552 = vmatprep.mubr.f32.mxu0 0.0
    %553 = vmatmul.mubr.f32.gmra.mrb[0].mxu0 %v278
    %v554 = vpop.f32.mrb[0].mxu0
    %v555 = vadd.f32 0.0, %v554
    %v556 = vpop.f32.mrb[0].mxu0
    %557 = vmatprep.mubr.f32.mxu0 0.0
    %558 = vmatmul.mubr.f32.gmra.mrb[0].mxu0 %v279
    %v559 = vpop.f32.mrb[0].mxu0
    %v560 = vadd.f32 0.0, %v559
    %v561 = vpop.f32.mrb[0].mxu0
    %562 = vdwg.mxu0
    %v563 = vlaneseq
    %v564 = vand.u32 %v563, 127
    %s565 = smul.u32 0, 128
    %v566 = vstv %s565
    %v567 = vadd.s32 %v566, %v564
    %s568 = sld [smem:[#allocation7]]
    %v569 = vstv %s568
    %vm570 = vcmp.lt.s32.totalorder %v567, %v569
    %v571 = vsel %vm570, %v485, -1e+09
    %v572 = vsel %vm570, %v490, -1e+09
    %v573 = vsel %vm570, %v495, -1e+09
    %v574 = vsel %vm570, %v500, -1e+09
    %v575 = vsel %vm570, %v505, -1e+09
    %v576 = vsel %vm570, %v510, -1e+09
    %v577 = vsel %vm570, %v515, -1e+09
    %v578 = vsel %vm570, %v520, -1e+09
    %v579 = vsel %vm570, %v525, -1e+09
    %v580 = vsel %vm570, %v530, -1e+09
    %v581 = vsel %vm570, %v535, -1e+09
    %v582 = vsel %vm570, %v540, -1e+09
    %v583 = vsel %vm570, %v545, -1e+09
    %v584 = vsel %vm570, %v550, -1e+09
    %v585 = vsel %vm570, %v555, -1e+09
    %v586 = vsel %vm570, %v560, -1e+09
    %v587 = vld [vmem:[#allocation2] sm:$0xff]
    %v588 = vld [vmem:[#allocation2 + $0x8] sm:$0xff]
    %v589 = vld [vmem:[#allocation2 + $0x10] sm:$0xff]
    %v590 = vld [vmem:[#allocation2 + $0x18] sm:$0xff]
    %v591 = vld [vmem:[#allocation2 + $0x20] sm:$0xff]
    %v592 = vld [vmem:[#allocation2 + $0x28] sm:$0xff]
    %v593 = vld [vmem:[#allocation2 + $0x30] sm:$0xff]
    %v594 = vld [vmem:[#allocation2 + $0x38] sm:$0xff]
    %v595 = vld [vmem:[#allocation2 + $0x40] sm:$0xff]
    %v596 = vld [vmem:[#allocation2 + $0x48] sm:$0xff]
    %v597 = vld [vmem:[#allocation2 + $0x50] sm:$0xff]
    %v598 = vld [vmem:[#allocation2 + $0x58] sm:$0xff]
    %v599 = vld [vmem:[#allocation2 + $0x60] sm:$0xff]
    %v600 = vld [vmem:[#allocation2 + $0x68] sm:$0xff]
    %v601 = vld [vmem:[#allocation2 + $0x70] sm:$0xff]
    %v602 = vld [vmem:[#allocation2 + $0x78] sm:$0xff]
    %603 = vmax.xlane.f32.xlu0 %v571
    %v604 = vpop.xlane.xlu0 %603
    %605 = vmax.xlane.f32.xlu0 %v572
    %v606 = vpop.xlane.xlu0 %605
    %607 = vmax.xlane.f32.xlu0 %v573
    %v608 = vpop.xlane.xlu0 %607
    %609 = vmax.xlane.f32.xlu0 %v574
    %v610 = vpop.xlane.xlu0 %609
    %611 = vmax.xlane.f32.xlu0 %v575
    %v612 = vpop.xlane.xlu0 %611
    %613 = vmax.xlane.f32.xlu0 %v576
    %v614 = vpop.xlane.xlu0 %613
    %615 = vmax.xlane.f32.xlu0 %v577
    %v616 = vpop.xlane.xlu0 %615
    %617 = vmax.xlane.f32.xlu0 %v578
    %v618 = vpop.xlane.xlu0 %617
    %619 = vmax.xlane.f32.xlu0 %v579
    %v620 = vpop.xlane.xlu0 %619
    %621 = vmax.xlane.f32.xlu0 %v580
    %v622 = vpop.xlane.xlu0 %621
    %623 = vmax.xlane.f32.xlu0 %v581
    %v624 = vpop.xlane.xlu0 %623
    %625 = vmax.xlane.f32.xlu0 %v582
    %v626 = vpop.xlane.xlu0 %625
    %627 = vmax.xlane.f32.xlu0 %v583
    %v628 = vpop.xlane.xlu0 %627
    %629 = vmax.xlane.f32.xlu0 %v584
    %v630 = vpop.xlane.xlu0 %629
    %631 = vmax.xlane.f32.xlu0 %v585
    %v632 = vpop.xlane.xlu0 %631
    %633 = vmax.xlane.f32.xlu0 %v586
    %v634 = vpop.xlane.xlu0 %633
    %v635 = vmax.f32 %v587, %v604
    %v636 = vmax.f32 %v588, %v606
    %v637 = vmax.f32 %v589, %v608
    %v638 = vmax.f32 %v590, %v610
    %v639 = vmax.f32 %v591, %v612
    %v640 = vmax.f32 %v592, %v614
    %v641 = vmax.f32 %v593, %v616
    %v642 = vmax.f32 %v594, %v618
    %v643 = vmax.f32 %v595, %v620
    %v644 = vmax.f32 %v596, %v622
    %v645 = vmax.f32 %v597, %v624
    %v646 = vmax.f32 %v598, %v626
    %v647 = vmax.f32 %v599, %v628
    %v648 = vmax.f32 %v600, %v630
    %v649 = vmax.f32 %v601, %v632
    %v650 = vmax.f32 %v602, %v634
    %652 = vset.pattern.permute.xlu0 0
    %653 = vperm.xlu0 %652, %v635
    %v654 = vpop.permute.xlu0 %653
    %657 = vset.pattern.permute.xlu0 0
    %658 = vperm.xlu0 %657, %v636
    %v659 = vpop.permute.xlu0 %658
    %662 = vset.pattern.permute.xlu0 0
    %663 = vperm.xlu0 %662, %v637
    %v664 = vpop.permute.xlu0 %663
    %667 = vset.pattern.permute.xlu0 0
    %668 = vperm.xlu0 %667, %v638
    %v669 = vpop.permute.xlu0 %668
    %672 = vset.pattern.permute.xlu0 0
    %673 = vperm.xlu0 %672, %v639
    %v674 = vpop.permute.xlu0 %673
    %677 = vset.pattern.permute.xlu0 0
    %678 = vperm.xlu0 %677, %v640
    %v679 = vpop.permute.xlu0 %678
    %682 = vset.pattern.permute.xlu0 0
    %683 = vperm.xlu0 %682, %v641
    %v684 = vpop.permute.xlu0 %683
    %687 = vset.pattern.permute.xlu0 0
    %688 = vperm.xlu0 %687, %v642
    %v689 = vpop.permute.xlu0 %688
    %692 = vset.pattern.permute.xlu0 0
    %693 = vperm.xlu0 %692, %v643
    %v694 = vpop.permute.xlu0 %693
    %697 = vset.pattern.permute.xlu0 0
    %698 = vperm.xlu0 %697, %v644
    %v699 = vpop.permute.xlu0 %698
    %702 = vset.pattern.permute.xlu0 0
    %703 = vperm.xlu0 %702, %v645
    %v704 = vpop.permute.xlu0 %703
    %707 = vset.pattern.permute.xlu0 0
    %708 = vperm.xlu0 %707, %v646
    %v709 = vpop.permute.xlu0 %708
    %712 = vset.pattern.permute.xlu0 0
    %713 = vperm.xlu0 %712, %v647
    %v714 = vpop.permute.xlu0 %713
    %717 = vset.pattern.permute.xlu0 0
    %718 = vperm.xlu0 %717, %v648
    %v719 = vpop.permute.xlu0 %718
    %722 = vset.pattern.permute.xlu0 0
    %723 = vperm.xlu0 %722, %v649
    %v724 = vpop.permute.xlu0 %723
    %727 = vset.pattern.permute.xlu0 0
    %728 = vperm.xlu0 %727, %v650
    %v729 = vpop.permute.xlu0 %728
    %v731 = vsub.f32 %v571, %v654
    %v732 = vsub.f32 %v572, %v659
    %v733 = vsub.f32 %v573, %v664
    %v734 = vsub.f32 %v574, %v669
    %v735 = vsub.f32 %v575, %v674
    %v736 = vsub.f32 %v576, %v679
    %v737 = vsub.f32 %v577, %v684
    %v738 = vsub.f32 %v578, %v689
    %v739 = vsub.f32 %v579, %v694
    %v740 = vsub.f32 %v580, %v699
    %v741 = vsub.f32 %v581, %v704
    %v742 = vsub.f32 %v582, %v709
    %v743 = vsub.f32 %v583, %v714
    %v744 = vsub.f32 %v584, %v719
    %v745 = vsub.f32 %v585, %v724
    %v746 = vsub.f32 %v586, %v729
    %v747 = vmul.f32 %v731, 1.442695
    %v748 = vpow.pop %v747
    %v749 = vmul.f32 %v732, 1.442695
    %v750 = vpow.pop %v749
    %v751 = vmul.f32 %v733, 1.442695
    %v752 = vpow.pop %v751
    %v753 = vmul.f32 %v734, 1.442695
    %v754 = vpow.pop %v753
    %v755 = vmul.f32 %v735, 1.442695
    %v756 = vpow.pop %v755
    %v757 = vmul.f32 %v736, 1.442695
    %v758 = vpow.pop %v757
    %v759 = vmul.f32 %v737, 1.442695
    %v760 = vpow.pop %v759
    %v761 = vmul.f32 %v738, 1.442695
    %v762 = vpow.pop %v761
    %v763 = vmul.f32 %v739, 1.442695
    %v764 = vpow.pop %v763
    %v765 = vmul.f32 %v740, 1.442695
    %v766 = vpow.pop %v765
    %v767 = vmul.f32 %v741, 1.442695
    %v768 = vpow.pop %v767
    %v769 = vmul.f32 %v742, 1.442695
    %v770 = vpow.pop %v769
    %v771 = vmul.f32 %v743, 1.442695
    %v772 = vpow.pop %v771
    %v773 = vmul.f32 %v744, 1.442695
    %v774 = vpow.pop %v773
    %v775 = vmul.f32 %v745, 1.442695
    %v776 = vpow.pop %v775
    %v777 = vmul.f32 %v746, 1.442695
    %v778 = vpow.pop %v777
    %v779 = vsub.f32 %v587, %v635
    %v780 = vsub.f32 %v588, %v636
    %v781 = vsub.f32 %v589, %v637
    %v782 = vsub.f32 %v590, %v638
    %v783 = vsub.f32 %v591, %v639
    %v784 = vsub.f32 %v592, %v640
    %v785 = vsub.f32 %v593, %v641
    %v786 = vsub.f32 %v594, %v642
    %v787 = vsub.f32 %v595, %v643
    %v788 = vsub.f32 %v596, %v644
    %v789 = vsub.f32 %v597, %v645
    %v790 = vsub.f32 %v598, %v646
    %v791 = vsub.f32 %v599, %v647
    %v792 = vsub.f32 %v600, %v648
    %v793 = vsub.f32 %v601, %v649
    %v794 = vsub.f32 %v602, %v650
    %v795 = vmul.f32 %v779, 1.442695
    %v796 = vpow.pop %v795
    %v797 = vmul.f32 %v780, 1.442695
    %v798 = vpow.pop %v797
    %v799 = vmul.f32 %v781, 1.442695
    %v800 = vpow.pop %v799
    %v801 = vmul.f32 %v782, 1.442695
    %v802 = vpow.pop %v801
    %v803 = vmul.f32 %v783, 1.442695
    %v804 = vpow.pop %v803
    %v805 = vmul.f32 %v784, 1.442695
    %v806 = vpow.pop %v805
    %v807 = vmul.f32 %v785, 1.442695
    %v808 = vpow.pop %v807
    %v809 = vmul.f32 %v786, 1.442695
    %v810 = vpow.pop %v809
    %v811 = vmul.f32 %v787, 1.442695
    %v812 = vpow.pop %v811
    %v813 = vmul.f32 %v788, 1.442695
    %v814 = vpow.pop %v813
    %v815 = vmul.f32 %v789, 1.442695
    %v816 = vpow.pop %v815
    %v817 = vmul.f32 %v790, 1.442695
    %v818 = vpow.pop %v817
    %v819 = vmul.f32 %v791, 1.442695
    %v820 = vpow.pop %v819
    %v821 = vmul.f32 %v792, 1.442695
    %v822 = vpow.pop %v821
    %v823 = vmul.f32 %v793, 1.442695
    %v824 = vpow.pop %v823
    %v825 = vmul.f32 %v794, 1.442695
    %v826 = vpow.pop %v825
    %v827 = vld [vmem:[#allocation3] sm:$0xff]
    %v828 = vld [vmem:[#allocation3 + $0x8] sm:$0xff]
    %v829 = vld [vmem:[#allocation3 + $0x10] sm:$0xff]
    %v830 = vld [vmem:[#allocation3 + $0x18] sm:$0xff]
    %v831 = vld [vmem:[#allocation3 + $0x20] sm:$0xff]
    %v832 = vld [vmem:[#allocation3 + $0x28] sm:$0xff]
    %v833 = vld [vmem:[#allocation3 + $0x30] sm:$0xff]
    %v834 = vld [vmem:[#allocation3 + $0x38] sm:$0xff]
    %v835 = vld [vmem:[#allocation3 + $0x40] sm:$0xff]
    %v836 = vld [vmem:[#allocation3 + $0x48] sm:$0xff]
    %v837 = vld [vmem:[#allocation3 + $0x50] sm:$0xff]
    %v838 = vld [vmem:[#allocation3 + $0x58] sm:$0xff]
    %v839 = vld [vmem:[#allocation3 + $0x60] sm:$0xff]
    %v840 = vld [vmem:[#allocation3 + $0x68] sm:$0xff]
    %v841 = vld [vmem:[#allocation3 + $0x70] sm:$0xff]
    %v842 = vld [vmem:[#allocation3 + $0x78] sm:$0xff]
    %v843 = vmul.f32 %v796, %v827
    %v844 = vmul.f32 %v798, %v828
    %v845 = vmul.f32 %v800, %v829
    %v846 = vmul.f32 %v802, %v830
    %v847 = vmul.f32 %v804, %v831
    %v848 = vmul.f32 %v806, %v832
    %v849 = vmul.f32 %v808, %v833
    %v850 = vmul.f32 %v810, %v834
    %v851 = vmul.f32 %v812, %v835
    %v852 = vmul.f32 %v814, %v836
    %v853 = vmul.f32 %v816, %v837
    %v854 = vmul.f32 %v818, %v838
    %v855 = vmul.f32 %v820, %v839
    %v856 = vmul.f32 %v822, %v840
    %v857 = vmul.f32 %v824, %v841
    %v858 = vmul.f32 %v826, %v842
    %859 = vadd.xlane.f32.xlu0 %v748
    %v860 = vpop.xlane.xlu0 %859
    %861 = vadd.xlane.f32.xlu0 %v750
    %v862 = vpop.xlane.xlu0 %861
    %863 = vadd.xlane.f32.xlu0 %v752
    %v864 = vpop.xlane.xlu0 %863
    %865 = vadd.xlane.f32.xlu0 %v754
    %v866 = vpop.xlane.xlu0 %865
    %867 = vadd.xlane.f32.xlu0 %v756
    %v868 = vpop.xlane.xlu0 %867
    %869 = vadd.xlane.f32.xlu0 %v758
    %v870 = vpop.xlane.xlu0 %869
    %871 = vadd.xlane.f32.xlu0 %v760
    %v872 = vpop.xlane.xlu0 %871
    %873 = vadd.xlane.f32.xlu0 %v762
    %v874 = vpop.xlane.xlu0 %873
    %875 = vadd.xlane.f32.xlu0 %v764
    %v876 = vpop.xlane.xlu0 %875
    %877 = vadd.xlane.f32.xlu0 %v766
    %v878 = vpop.xlane.xlu0 %877
    %879 = vadd.xlane.f32.xlu0 %v768
    %v880 = vpop.xlane.xlu0 %879
    %881 = vadd.xlane.f32.xlu0 %v770
    %v882 = vpop.xlane.xlu0 %881
    %883 = vadd.xlane.f32.xlu0 %v772
    %v884 = vpop.xlane.xlu0 %883
    %885 = vadd.xlane.f32.xlu0 %v774
    %v886 = vpop.xlane.xlu0 %885
    %887 = vadd.xlane.f32.xlu0 %v776
    %v888 = vpop.xlane.xlu0 %887
    %889 = vadd.xlane.f32.xlu0 %v778
    %v890 = vpop.xlane.xlu0 %889
    %v891 = vadd.f32 %v843, %v860
    %v892 = vadd.f32 %v844, %v862
    %v893 = vadd.f32 %v845, %v864
    %v894 = vadd.f32 %v846, %v866
    %v895 = vadd.f32 %v847, %v868
    %v896 = vadd.f32 %v848, %v870
    %v897 = vadd.f32 %v849, %v872
    %v898 = vadd.f32 %v850, %v874
    %v899 = vadd.f32 %v851, %v876
    %v900 = vadd.f32 %v852, %v878
    %v901 = vadd.f32 %v853, %v880
    %v902 = vadd.f32 %v854, %v882
    %v903 = vadd.f32 %v855, %v884
    %v904 = vadd.f32 %v856, %v886
    %v905 = vadd.f32 %v857, %v888
    %v906 = vadd.f32 %v858, %v890
    %vm907 = vcmask 7168
    %908 = vst.msk [vmem:[#allocation3] sm:$0xff] %vm907, %v891
    %909 = vst.msk [vmem:[#allocation3 + $0x8] sm:$0xff] %vm907, %v892
    %910 = vst.msk [vmem:[#allocation3 + $0x10] sm:$0xff] %vm907, %v893
    %911 = vst.msk [vmem:[#allocation3 + $0x18] sm:$0xff] %vm907, %v894
    %912 = vst.msk [vmem:[#allocation3 + $0x20] sm:$0xff] %vm907, %v895
    %913 = vst.msk [vmem:[#allocation3 + $0x28] sm:$0xff] %vm907, %v896
    %914 = vst.msk [vmem:[#allocation3 + $0x30] sm:$0xff] %vm907, %v897
    %915 = vst.msk [vmem:[#allocation3 + $0x38] sm:$0xff] %vm907, %v898
    %916 = vst.msk [vmem:[#allocation3 + $0x40] sm:$0xff] %vm907, %v899
    %917 = vst.msk [vmem:[#allocation3 + $0x48] sm:$0xff] %vm907, %v900
    %918 = vst.msk [vmem:[#allocation3 + $0x50] sm:$0xff] %vm907, %v901
    %919 = vst.msk [vmem:[#allocation3 + $0x58] sm:$0xff] %vm907, %v902
    %920 = vst.msk [vmem:[#allocation3 + $0x60] sm:$0xff] %vm907, %v903
    %921 = vst.msk [vmem:[#allocation3 + $0x68] sm:$0xff] %vm907, %v904
    %922 = vst.msk [vmem:[#allocation3 + $0x70] sm:$0xff] %vm907, %v905
    %923 = vst.msk [vmem:[#allocation3 + $0x78] sm:$0xff] %vm907, %v906
    %924 = vst.msk [vmem:[#allocation2] sm:$0xff] %vm907, %v635
    %925 = vst.msk [vmem:[#allocation2 + $0x8] sm:$0xff] %vm907, %v636
    %926 = vst.msk [vmem:[#allocation2 + $0x10] sm:$0xff] %vm907, %v637
    %927 = vst.msk [vmem:[#allocation2 + $0x18] sm:$0xff] %vm907, %v638
    %928 = vst.msk [vmem:[#allocation2 + $0x20] sm:$0xff] %vm907, %v639
    %929 = vst.msk [vmem:[#allocation2 + $0x28] sm:$0xff] %vm907, %v640
    %930 = vst.msk [vmem:[#allocation2 + $0x30] sm:$0xff] %vm907, %v641
    %931 = vst.msk [vmem:[#allocation2 + $0x38] sm:$0xff] %vm907, %v642
    %932 = vst.msk [vmem:[#allocation2 + $0x40] sm:$0xff] %vm907, %v643
    %933 = vst.msk [vmem:[#allocation2 + $0x48] sm:$0xff] %vm907, %v644
    %934 = vst.msk [vmem:[#allocation2 + $0x50] sm:$0xff] %vm907, %v645
    %935 = vst.msk [vmem:[#allocation2 + $0x58] sm:$0xff] %vm907, %v646
    %936 = vst.msk [vmem:[#allocation2 + $0x60] sm:$0xff] %vm907, %v647
    %937 = vst.msk [vmem:[#allocation2 + $0x68] sm:$0xff] %vm907, %v648
    %938 = vst.msk [vmem:[#allocation2 + $0x70] sm:$0xff] %vm907, %v649
    %939 = vst.msk [vmem:[#allocation2 + $0x78] sm:$0xff] %vm907, %v650
    %vm940 = vcmp.eq.f32.partialorder %v571, %v604
    %vm941 = vcmp.eq.f32.partialorder %v572, %v606
    %vm942 = vcmp.eq.f32.partialorder %v573, %v608
    %vm943 = vcmp.eq.f32.partialorder %v574, %v610
    %vm944 = vcmp.eq.f32.partialorder %v575, %v612
    %vm945 = vcmp.eq.f32.partialorder %v576, %v614
    %vm946 = vcmp.eq.f32.partialorder %v577, %v616
    %vm947 = vcmp.eq.f32.partialorder %v578, %v618
    %vm948 = vcmp.eq.f32.partialorder %v579, %v620
    %vm949 = vcmp.eq.f32.partialorder %v580, %v622
    %vm950 = vcmp.eq.f32.partialorder %v581, %v624
    %vm951 = vcmp.eq.f32.partialorder %v582, %v626
    %vm952 = vcmp.eq.f32.partialorder %v583, %v628
    %vm953 = vcmp.eq.f32.partialorder %v584, %v630
    %vm954 = vcmp.eq.f32.partialorder %v585, %v632
    %vm955 = vcmp.eq.f32.partialorder %v586, %v634
    %v956 = vsel %vm940, %v564, 128
    %v957 = vsel %vm941, %v564, 128
    %v958 = vsel %vm942, %v564, 128
    %v959 = vsel %vm943, %v564, 128
    %v960 = vsel %vm944, %v564, 128
    %v961 = vsel %vm945, %v564, 128
    %v962 = vsel %vm946, %v564, 128
    %v963 = vsel %vm947, %v564, 128
    %v964 = vsel %vm948, %v564, 128
    %v965 = vsel %vm949, %v564, 128
    %v966 = vsel %vm950, %v564, 128
    %v967 = vsel %vm951, %v564, 128
    %v968 = vsel %vm952, %v564, 128
    %v969 = vsel %vm953, %v564, 128
    %v970 = vsel %vm954, %v564, 128
    %v971 = vsel %vm955, %v564, 128
    %v972 = vand.u32 %v956, 65535
    %v973 = vshra.s32 %v956, 16
    %v974 = vcvt.s32.f32 %v972
    %v975 = vcvt.s32.f32 %v973
    %976 = vmin.xlane.f32.xlu0 %v975
    %v977 = vpop.xlane.xlu0 %976
    %vm978 = vcmp.eq.f32.partialorder %v975, %v977
    %v979 = vsel %vm978, %v974, inf
    %980 = vmin.xlane.f32.xlu0 %v979
    %v981 = vpop.xlane.xlu0 %980
    %v982 = vcvt.f32.s32 %v981
    %v983 = vcvt.f32.s32 %v977
    %v984 = vshll.u32 %v983, 16
    %v985 = vadd.s32 %v984, %v982
    %v986 = vand.u32 %v957, 65535
    %v987 = vshra.s32 %v957, 16
    %v988 = vcvt.s32.f32 %v986
    %v989 = vcvt.s32.f32 %v987
    %990 = vmin.xlane.f32.xlu0 %v989
    %v991 = vpop.xlane.xlu0 %990
    %vm992 = vcmp.eq.f32.partialorder %v989, %v991
    %v993 = vsel %vm992, %v988, inf
    %994 = vmin.xlane.f32.xlu0 %v993
    %v995 = vpop.xlane.xlu0 %994
    %v996 = vcvt.f32.s32 %v995
    %v997 = vcvt.f32.s32 %v991
    %v998 = vshll.u32 %v997, 16
    %v999 = vadd.s32 %v998, %v996
    %v1000 = vand.u32 %v958, 65535
    %v1001 = vshra.s32 %v958, 16
    %v1002 = vcvt.s32.f32 %v1000
    %v1003 = vcvt.s32.f32 %v1001
    %1004 = vmin.xlane.f32.xlu0 %v1003
    %v1005 = vpop.xlane.xlu0 %1004
    %vm1006 = vcmp.eq.f32.partialorder %v1003, %v1005
    %v1007 = vsel %vm1006, %v1002, inf
    %1008 = vmin.xlane.f32.xlu0 %v1007
    %v1009 = vpop.xlane.xlu0 %1008
    %v1010 = vcvt.f32.s32 %v1009
    %v1011 = vcvt.f32.s32 %v1005
    %v1012 = vshll.u32 %v1011, 16
    %v1013 = vadd.s32 %v1012, %v1010
    %v1014 = vand.u32 %v959, 65535
    %v1015 = vshra.s32 %v959, 16
    %v1016 = vcvt.s32.f32 %v1014
    %v1017 = vcvt.s32.f32 %v1015
    %1018 = vmin.xlane.f32.xlu0 %v1017
    %v1019 = vpop.xlane.xlu0 %1018
    %vm1020 = vcmp.eq.f32.partialorder %v1017, %v1019
    %v1021 = vsel %vm1020, %v1016, inf
    %1022 = vmin.xlane.f32.xlu0 %v1021
    %v1023 = vpop.xlane.xlu0 %1022
    %v1024 = vcvt.f32.s32 %v1023
    %v1025 = vcvt.f32.s32 %v1019
    %v1026 = vshll.u32 %v1025, 16
    %v1027 = vadd.s32 %v1026, %v1024
    %v1028 = vand.u32 %v960, 65535
    %v1029 = vshra.s32 %v960, 16
    %v1030 = vcvt.s32.f32 %v1028
    %v1031 = vcvt.s32.f32 %v1029
    %1032 = vmin.xlane.f32.xlu0 %v1031
    %v1033 = vpop.xlane.xlu0 %1032
    %vm1034 = vcmp.eq.f32.partialorder %v1031, %v1033
    %v1035 = vsel %vm1034, %v1030, inf
    %1036 = vmin.xlane.f32.xlu0 %v1035
    %v1037 = vpop.xlane.xlu0 %1036
    %v1038 = vcvt.f32.s32 %v1037
    %v1039 = vcvt.f32.s32 %v1033
    %v1040 = vshll.u32 %v1039, 16
    %v1041 = vadd.s32 %v1040, %v1038
    %v1042 = vand.u32 %v961, 65535
    %v1043 = vshra.s32 %v961, 16
    %v1044 = vcvt.s32.f32 %v1042
    %v1045 = vcvt.s32.f32 %v1043
    %1046 = vmin.xlane.f32.xlu0 %v1045
    %v1047 = vpop.xlane.xlu0 %1046
    %vm1048 = vcmp.eq.f32.partialorder %v1045, %v1047
    %v1049 = vsel %vm1048, %v1044, inf
    %1050 = vmin.xlane.f32.xlu0 %v1049
    %v1051 = vpop.xlane.xlu0 %1050
    %v1052 = vcvt.f32.s32 %v1051
    %v1053 = vcvt.f32.s32 %v1047
    %v1054 = vshll.u32 %v1053, 16
    %v1055 = vadd.s32 %v1054, %v1052
    %v1056 = vand.u32 %v962, 65535
    %v1057 = vshra.s32 %v962, 16
    %v1058 = vcvt.s32.f32 %v1056
    %v1059 = vcvt.s32.f32 %v1057
    %1060 = vmin.xlane.f32.xlu0 %v1059
    %v1061 = vpop.xlane.xlu0 %1060
    %vm1062 = vcmp.eq.f32.partialorder %v1059, %v1061
    %v1063 = vsel %vm1062, %v1058, inf
    %1064 = vmin.xlane.f32.xlu0 %v1063
    %v1065 = vpop.xlane.xlu0 %1064
    %v1066 = vcvt.f32.s32 %v1065
    %v1067 = vcvt.f32.s32 %v1061
    %v1068 = vshll.u32 %v1067, 16
    %v1069 = vadd.s32 %v1068, %v1066
    %v1070 = vand.u32 %v963, 65535
    %v1071 = vshra.s32 %v963, 16
    %v1072 = vcvt.s32.f32 %v1070
    %v1073 = vcvt.s32.f32 %v1071
    %1074 = vmin.xlane.f32.xlu0 %v1073
    %v1075 = vpop.xlane.xlu0 %1074
    %vm1076 = vcmp.eq.f32.partialorder %v1073, %v1075
    %v1077 = vsel %vm1076, %v1072, inf
    %1078 = vmin.xlane.f32.xlu0 %v1077
    %v1079 = vpop.xlane.xlu0 %1078
    %v1080 = vcvt.f32.s32 %v1079
    %v1081 = vcvt.f32.s32 %v1075
    %v1082 = vshll.u32 %v1081, 16
    %v1083 = vadd.s32 %v1082, %v1080
    %v1084 = vand.u32 %v964, 65535
    %v1085 = vshra.s32 %v964, 16
    %v1086 = vcvt.s32.f32 %v1084
    %v1087 = vcvt.s32.f32 %v1085
    %1088 = vmin.xlane.f32.xlu0 %v1087
    %v1089 = vpop.xlane.xlu0 %1088
    %vm1090 = vcmp.eq.f32.partialorder %v1087, %v1089
    %v1091 = vsel %vm1090, %v1086, inf
    %1092 = vmin.xlane.f32.xlu0 %v1091
    %v1093 = vpop.xlane.xlu0 %1092
    %v1094 = vcvt.f32.s32 %v1093
    %v1095 = vcvt.f32.s32 %v1089
    %v1096 = vshll.u32 %v1095, 16
    %v1097 = vadd.s32 %v1096, %v1094
    %v1098 = vand.u32 %v965, 65535
    %v1099 = vshra.s32 %v965, 16
    %v1100 = vcvt.s32.f32 %v1098
    %v1101 = vcvt.s32.f32 %v1099
    %1102 = vmin.xlane.f32.xlu0 %v1101
    %v1103 = vpop.xlane.xlu0 %1102
    %vm1104 = vcmp.eq.f32.partialorder %v1101, %v1103
    %v1105 = vsel %vm1104, %v1100, inf
    %1106 = vmin.xlane.f32.xlu0 %v1105
    %v1107 = vpop.xlane.xlu0 %1106
    %v1108 = vcvt.f32.s32 %v1107
    %v1109 = vcvt.f32.s32 %v1103
    %v1110 = vshll.u32 %v1109, 16
    %v1111 = vadd.s32 %v1110, %v1108
    %v1112 = vand.u32 %v966, 65535
    %v1113 = vshra.s32 %v966, 16
    %v1114 = vcvt.s32.f32 %v1112
    %v1115 = vcvt.s32.f32 %v1113
    %1116 = vmin.xlane.f32.xlu0 %v1115
    %v1117 = vpop.xlane.xlu0 %1116
    %vm1118 = vcmp.eq.f32.partialorder %v1115, %v1117
    %v1119 = vsel %vm1118, %v1114, inf
    %1120 = vmin.xlane.f32.xlu0 %v1119
    %v1121 = vpop.xlane.xlu0 %1120
    %v1122 = vcvt.f32.s32 %v1121
    %v1123 = vcvt.f32.s32 %v1117
    %v1124 = vshll.u32 %v1123, 16
    %v1125 = vadd.s32 %v1124, %v1122
    %v1126 = vand.u32 %v967, 65535
    %v1127 = vshra.s32 %v967, 16
    %v1128 = vcvt.s32.f32 %v1126
    %v1129 = vcvt.s32.f32 %v1127
    %1130 = vmin.xlane.f32.xlu0 %v1129
    %v1131 = vpop.xlane.xlu0 %1130
    %vm1132 = vcmp.eq.f32.partialorder %v1129, %v1131
    %v1133 = vsel %vm1132, %v1128, inf
    %1134 = vmin.xlane.f32.xlu0 %v1133
    %v1135 = vpop.xlane.xlu0 %1134
    %v1136 = vcvt.f32.s32 %v1135
    %v1137 = vcvt.f32.s32 %v1131
    %v1138 = vshll.u32 %v1137, 16
    %v1139 = vadd.s32 %v1138, %v1136
    %v1140 = vand.u32 %v968, 65535
    %v1141 = vshra.s32 %v968, 16
    %v1142 = vcvt.s32.f32 %v1140
    %v1143 = vcvt.s32.f32 %v1141
    %1144 = vmin.xlane.f32.xlu0 %v1143
    %v1145 = vpop.xlane.xlu0 %1144
    %vm1146 = vcmp.eq.f32.partialorder %v1143, %v1145
    %v1147 = vsel %vm1146, %v1142, inf
    %1148 = vmin.xlane.f32.xlu0 %v1147
    %v1149 = vpop.xlane.xlu0 %1148
    %v1150 = vcvt.f32.s32 %v1149
    %v1151 = vcvt.f32.s32 %v1145
    %v1152 = vshll.u32 %v1151, 16
    %v1153 = vadd.s32 %v1152, %v1150
    %v1154 = vand.u32 %v969, 65535
    %v1155 = vshra.s32 %v969, 16
    %v1156 = vcvt.s32.f32 %v1154
    %v1157 = vcvt.s32.f32 %v1155
    %1158 = vmin.xlane.f32.xlu0 %v1157
    %v1159 = vpop.xlane.xlu0 %1158
    %vm1160 = vcmp.eq.f32.partialorder %v1157, %v1159
    %v1161 = vsel %vm1160, %v1156, inf
    %1162 = vmin.xlane.f32.xlu0 %v1161
    %v1163 = vpop.xlane.xlu0 %1162
    %v1164 = vcvt.f32.s32 %v1163
    %v1165 = vcvt.f32.s32 %v1159
    %v1166 = vshll.u32 %v1165, 16
    %v1167 = vadd.s32 %v1166, %v1164
    %v1168 = vand.u32 %v970, 65535
    %v1169 = vshra.s32 %v970, 16
    %v1170 = vcvt.s32.f32 %v1168
    %v1171 = vcvt.s32.f32 %v1169
    %1172 = vmin.xlane.f32.xlu0 %v1171
    %v1173 = vpop.xlane.xlu0 %1172
    %vm1174 = vcmp.eq.f32.partialorder %v1171, %v1173
    %v1175 = vsel %vm1174, %v1170, inf
    %1176 = vmin.xlane.f32.xlu0 %v1175
    %v1177 = vpop.xlane.xlu0 %1176
    %v1178 = vcvt.f32.s32 %v1177
    %v1179 = vcvt.f32.s32 %v1173
    %v1180 = vshll.u32 %v1179, 16
    %v1181 = vadd.s32 %v1180, %v1178
    %v1182 = vand.u32 %v971, 65535
    %v1183 = vshra.s32 %v971, 16
    %v1184 = vcvt.s32.f32 %v1182
    %v1185 = vcvt.s32.f32 %v1183
    %1186 = vmin.xlane.f32.xlu0 %v1185
    %v1187 = vpop.xlane.xlu0 %1186
    %vm1188 = vcmp.eq.f32.partialorder %v1185, %v1187
    %v1189 = vsel %vm1188, %v1184, inf
    %1190 = vmin.xlane.f32.xlu0 %v1189
    %v1191 = vpop.xlane.xlu0 %1190
    %v1192 = vcvt.f32.s32 %v1191
    %v1193 = vcvt.f32.s32 %v1187
    %v1194 = vshll.u32 %v1193, 16
    %v1195 = vadd.s32 %v1194, %v1192
    %vm1196 = vcmp.gt.f32.partialorder %v604, %v587
    %vm1197 = vcmp.gt.f32.partialorder %v606, %v588
    %vm1198 = vcmp.gt.f32.partialorder %v608, %v589
    %vm1199 = vcmp.gt.f32.partialorder %v610, %v590
    %vm1200 = vcmp.gt.f32.partialorder %v612, %v591
    %vm1201 = vcmp.gt.f32.partialorder %v614, %v592
    %vm1202 = vcmp.gt.f32.partialorder %v616, %v593
    %vm1203 = vcmp.gt.f32.partialorder %v618, %v594
    %vm1204 = vcmp.gt.f32.partialorder %v620, %v595
    %vm1205 = vcmp.gt.f32.partialorder %v622, %v596
    %vm1206 = vcmp.gt.f32.partialorder %v624, %v597
    %vm1207 = vcmp.gt.f32.partialorder %v626, %v598
    %vm1208 = vcmp.gt.f32.partialorder %v628, %v599
    %vm1209 = vcmp.gt.f32.partialorder %v630, %v600
    %vm1210 = vcmp.gt.f32.partialorder %v632, %v601
    %vm1211 = vcmp.gt.f32.partialorder %v634, %v602
    %v1212 = vadd.s32 %v566, %v985
    %v1213 = vadd.s32 %v566, %v999
    %v1214 = vadd.s32 %v566, %v1013
    %v1215 = vadd.s32 %v566, %v1027
    %v1216 = vadd.s32 %v566, %v1041
    %v1217 = vadd.s32 %v566, %v1055
    %v1218 = vadd.s32 %v566, %v1069
    %v1219 = vadd.s32 %v566, %v1083
    %v1220 = vadd.s32 %v566, %v1097
    %v1221 = vadd.s32 %v566, %v1111
    %v1222 = vadd.s32 %v566, %v1125
    %v1223 = vadd.s32 %v566, %v1139
    %v1224 = vadd.s32 %v566, %v1153
    %v1225 = vadd.s32 %v566, %v1167
    %v1226 = vadd.s32 %v566, %v1181
    %v1227 = vadd.s32 %v566, %v1195
    %v1228 = vld [vmem:[#allocation5] sm:$0xff]
    %v1229 = vld [vmem:[#allocation5 + $0x8] sm:$0xff]
    %v1230 = vld [vmem:[#allocation5 + $0x10] sm:$0xff]
    %v1231 = vld [vmem:[#allocation5 + $0x18] sm:$0xff]
    %v1232 = vld [vmem:[#allocation5 + $0x20] sm:$0xff]
    %v1233 = vld [vmem:[#allocation5 + $0x28] sm:$0xff]
    %v1234 = vld [vmem:[#allocation5 + $0x30] sm:$0xff]
    %v1235 = vld [vmem:[#allocation5 + $0x38] sm:$0xff]
    %v1236 = vld [vmem:[#allocation5 + $0x40] sm:$0xff]
    %v1237 = vld [vmem:[#allocation5 + $0x48] sm:$0xff]
    %v1238 = vld [vmem:[#allocation5 + $0x50] sm:$0xff]
    %v1239 = vld [vmem:[#allocation5 + $0x58] sm:$0xff]
    %v1240 = vld [vmem:[#allocation5 + $0x60] sm:$0xff]
    %v1241 = vld [vmem:[#allocation5 + $0x68] sm:$0xff]
    %v1242 = vld [vmem:[#allocation5 + $0x70] sm:$0xff]
    %v1243 = vld [vmem:[#allocation5 + $0x78] sm:$0xff]
    %v1244 = vsel %vm1196, %v1212, %v1228
    %v1245 = vsel %vm1197, %v1213, %v1229
    %v1246 = vsel %vm1198, %v1214, %v1230
    %v1247 = vsel %vm1199, %v1215, %v1231
    %v1248 = vsel %vm1200, %v1216, %v1232
    %v1249 = vsel %vm1201, %v1217, %v1233
    %v1250 = vsel %vm1202, %v1218, %v1234
    %v1251 = vsel %vm1203, %v1219, %v1235
    %v1252 = vsel %vm1204, %v1220, %v1236
    %v1253 = vsel %vm1205, %v1221, %v1237
    %v1254 = vsel %vm1206, %v1222, %v1238
    %v1255 = vsel %vm1207, %v1223, %v1239
    %v1256 = vsel %vm1208, %v1224, %v1240
    %v1257 = vsel %vm1209, %v1225, %v1241
    %v1258 = vsel %vm1210, %v1226, %v1242
    %v1259 = vsel %vm1211, %v1227, %v1243
    %1260 = vst.msk [vmem:[#allocation5] sm:$0xff] %vm907, %v1244
    %1261 = vst.msk [vmem:[#allocation5 + $0x8] sm:$0xff] %vm907, %v1245
    %1262 = vst.msk [vmem:[#allocation5 + $0x10] sm:$0xff] %vm907, %v1246
    %1263 = vst.msk [vmem:[#allocation5 + $0x18] sm:$0xff] %vm907, %v1247
    %1264 = vst.msk [vmem:[#allocation5 + $0x20] sm:$0xff] %vm907, %v1248
    %1265 = vst.msk [vmem:[#allocation5 + $0x28] sm:$0xff] %vm907, %v1249
    %1266 = vst.msk [vmem:[#allocation5 + $0x30] sm:$0xff] %vm907, %v1250
    %1267 = vst.msk [vmem:[#allocation5 + $0x38] sm:$0xff] %vm907, %v1251
    %1268 = vst.msk [vmem:[#allocation5 + $0x40] sm:$0xff] %vm907, %v1252
    %1269 = vst.msk [vmem:[#allocation5 + $0x48] sm:$0xff] %vm907, %v1253
    %1270 = vst.msk [vmem:[#allocation5 + $0x50] sm:$0xff] %vm907, %v1254
    %1271 = vst.msk [vmem:[#allocation5 + $0x58] sm:$0xff] %vm907, %v1255
    %1272 = vst.msk [vmem:[#allocation5 + $0x60] sm:$0xff] %vm907, %v1256
    %1273 = vst.msk [vmem:[#allocation5 + $0x68] sm:$0xff] %vm907, %v1257
    %1274 = vst.msk [vmem:[#allocation5 + $0x70] sm:$0xff] %vm907, %v1258
    %1275 = vst.msk [vmem:[#allocation5 + $0x78] sm:$0xff] %vm907, %v1259
    // Predicated region
    $region34: #{tpu_custom_call.1} parent=1 // pred_check
      %p1276 = pneg %p296
    $region35: #{tpu_custom_call.1} parent=1 // pred_check_branch
      %1278 = sbr.rel (%p1276) target = $region37
    $region36: #{tpu_custom_call.1} parent=1 // pred_region
      %v1279 = vld [vmem:[#allocation2] sm:$0xff]
      %v1280 = vld [vmem:[#allocation2 + $0x8] sm:$0xff]
      %v1281 = vld [vmem:[#allocation2 + $0x10] sm:$0xff]
      %v1282 = vld [vmem:[#allocation2 + $0x18] sm:$0xff]
      %v1283 = vld [vmem:[#allocation2 + $0x20] sm:$0xff]
      %v1284 = vld [vmem:[#allocation2 + $0x28] sm:$0xff]
      %v1285 = vld [vmem:[#allocation2 + $0x30] sm:$0xff]
      %v1286 = vld [vmem:[#allocation2 + $0x38] sm:$0xff]
      %v1287 = vld [vmem:[#allocation2 + $0x40] sm:$0xff]
      %v1288 = vld [vmem:[#allocation2 + $0x48] sm:$0xff]
      %v1289 = vld [vmem:[#allocation2 + $0x50] sm:$0xff]
      %v1290 = vld [vmem:[#allocation2 + $0x58] sm:$0xff]
      %v1291 = vld [vmem:[#allocation2 + $0x60] sm:$0xff]
      %v1292 = vld [vmem:[#allocation2 + $0x68] sm:$0xff]
      %v1293 = vld [vmem:[#allocation2 + $0x70] sm:$0xff]
      %v1294 = vld [vmem:[#allocation2 + $0x78] sm:$0xff]
      %v1295 = vld [vmem:[#allocation3] sm:$0xff]
      %v1296 = vld [vmem:[#allocation3 + $0x8] sm:$0xff]
      %v1297 = vld [vmem:[#allocation3 + $0x10] sm:$0xff]
      %v1298 = vld [vmem:[#allocation3 + $0x18] sm:$0xff]
      %v1299 = vld [vmem:[#allocation3 + $0x20] sm:$0xff]
      %v1300 = vld [vmem:[#allocation3 + $0x28] sm:$0xff]
      %v1301 = vld [vmem:[#allocation3 + $0x30] sm:$0xff]
      %v1302 = vld [vmem:[#allocation3 + $0x38] sm:$0xff]
      %v1303 = vld [vmem:[#allocation3 + $0x40] sm:$0xff]
      %v1304 = vld [vmem:[#allocation3 + $0x48] sm:$0xff]
      %v1305 = vld [vmem:[#allocation3 + $0x50] sm:$0xff]
      %v1306 = vld [vmem:[#allocation3 + $0x58] sm:$0xff]
      %v1307 = vld [vmem:[#allocation3 + $0x60] sm:$0xff]
      %v1308 = vld [vmem:[#allocation3 + $0x68] sm:$0xff]
      %v1309 = vld [vmem:[#allocation3 + $0x70] sm:$0xff]
      %v1310 = vld [vmem:[#allocation3 + $0x78] sm:$0xff]
      %v1311 = vlog2.pop %v1295
      %v1312 = vmul.f32 %v1311, 0.6931472
      %v1313 = vlog2.pop %v1296
      %v1314 = vmul.f32 %v1313, 0.6931472
      %v1315 = vlog2.pop %v1297
      %v1316 = vmul.f32 %v1315, 0.6931472
      %v1317 = vlog2.pop %v1298
      %v1318 = vmul.f32 %v1317, 0.6931472
      %v1319 = vlog2.pop %v1299
      %v1320 = vmul.f32 %v1319, 0.6931472
      %v1321 = vlog2.pop %v1300
      %v1322 = vmul.f32 %v1321, 0.6931472
      %v1323 = vlog2.pop %v1301
      %v1324 = vmul.f32 %v1323, 0.6931472
      %v1325 = vlog2.pop %v1302
      %v1326 = vmul.f32 %v1325, 0.6931472
      %v1327 = vlog2.pop %v1303
      %v1328 = vmul.f32 %v1327, 0.6931472
      %v1329 = vlog2.pop %v1304
      %v1330 = vmul.f32 %v1329, 0.6931472
      %v1331 = vlog2.pop %v1305
      %v1332 = vmul.f32 %v1331, 0.6931472
      %v1333 = vlog2.pop %v1306
      %v1334 = vmul.f32 %v1333, 0.6931472
      %v1335 = vlog2.pop %v1307
      %v1336 = vmul.f32 %v1335, 0.6931472
      %v1337 = vlog2.pop %v1308
      %v1338 = vmul.f32 %v1337, 0.6931472
      %v1339 = vlog2.pop %v1309
      %v1340 = vmul.f32 %v1339, 0.6931472
      %v1341 = vlog2.pop %v1310
      %v1342 = vmul.f32 %v1341, 0.6931472
      %v1343 = vadd.f32 %v1279, %v1312
      %v1344 = vadd.f32 %v1280, %v1314
      %v1345 = vadd.f32 %v1281, %v1316
      %v1346 = vadd.f32 %v1282, %v1318
      %v1347 = vadd.f32 %v1283, %v1320
      %v1348 = vadd.f32 %v1284, %v1322
      %v1349 = vadd.f32 %v1285, %v1324
      %v1350 = vadd.f32 %v1286, %v1326
      %v1351 = vadd.f32 %v1287, %v1328
      %v1352 = vadd.f32 %v1288, %v1330
      %v1353 = vadd.f32 %v1289, %v1332
      %v1354 = vadd.f32 %v1290, %v1334
      %v1355 = vadd.f32 %v1291, %v1336
      %v1356 = vadd.f32 %v1292, %v1338
      %v1357 = vadd.f32 %v1293, %v1340
      %v1358 = vadd.f32 %v1294, %v1342
      %s1359 = smul.u32 0, 128
      %v1360 = vlaneseq
      %v1361 = vshrl.u32 %v1360, 7
      %v1362 = vadd.s32 %v1361, 8
      %v1363 = vadd.s32 %v1361, 16
      %v1364 = vadd.s32 %v1361, 24
      %v1365 = vadd.s32 %v1361, 32
      %v1366 = vadd.s32 %v1361, 40
      %v1367 = vadd.s32 %v1361, 48
      %v1368 = vadd.s32 %v1361, 56
      %v1369 = vadd.s32 %v1361, 64
      %v1370 = vadd.s32 %v1361, 72
      %v1371 = vadd.s32 %v1361, 80
      %v1372 = vadd.s32 %v1361, 88
      %v1373 = vadd.s32 %v1361, 96
      %v1374 = vadd.s32 %v1361, 104
      %v1375 = vadd.s32 %v1361, 112
      %v1376 = vadd.s32 %v1361, 120
      %v1377 = vstv %s1359
      %v1378 = vadd.s32 %v1377, %v1361
      %v1379 = vadd.s32 %v1377, %v1362
      %v1380 = vadd.s32 %v1377, %v1363
      %v1381 = vadd.s32 %v1377, %v1364
      %v1382 = vadd.s32 %v1377, %v1365
      %v1383 = vadd.s32 %v1377, %v1366
      %v1384 = vadd.s32 %v1377, %v1367
      %v1385 = vadd.s32 %v1377, %v1368
      %v1386 = vadd.s32 %v1377, %v1369
      %v1387 = vadd.s32 %v1377, %v1370
      %v1388 = vadd.s32 %v1377, %v1371
      %v1389 = vadd.s32 %v1377, %v1372
      %v1390 = vadd.s32 %v1377, %v1373
      %v1391 = vadd.s32 %v1377, %v1374
      %v1392 = vadd.s32 %v1377, %v1375
      %v1393 = vadd.s32 %v1377, %v1376
      %v1394 = vld [vmem:[#allocation4] sm:$0xff]
      %v1395 = vld [vmem:[#allocation4 + $0x8] sm:$0xff]
      %v1396 = vld [vmem:[#allocation4 + $0x10] sm:$0xff]
      %v1397 = vld [vmem:[#allocation4 + $0x18] sm:$0xff]
      %v1398 = vld [vmem:[#allocation4 + $0x20] sm:$0xff]
      %v1399 = vld [vmem:[#allocation4 + $0x28] sm:$0xff]
      %v1400 = vld [vmem:[#allocation4 + $0x30] sm:$0xff]
      %v1401 = vld [vmem:[#allocation4 + $0x38] sm:$0xff]
      %v1402 = vld [vmem:[#allocation4 + $0x40] sm:$0xff]
      %v1403 = vld [vmem:[#allocation4 + $0x48] sm:$0xff]
      %v1404 = vld [vmem:[#allocation4 + $0x50] sm:$0xff]
      %v1405 = vld [vmem:[#allocation4 + $0x58] sm:$0xff]
      %v1406 = vld [vmem:[#allocation4 + $0x60] sm:$0xff]
      %v1407 = vld [vmem:[#allocation4 + $0x68] sm:$0xff]
      %v1408 = vld [vmem:[#allocation4 + $0x70] sm:$0xff]
      %v1409 = vld [vmem:[#allocation4 + $0x78] sm:$0xff]
      %v1410 = vsub.f32 %v1343, %v1394
      %v1411 = vsub.f32 %v1344, %v1395
      %v1412 = vsub.f32 %v1345, %v1396
      %v1413 = vsub.f32 %v1346, %v1397
      %v1414 = vsub.f32 %v1347, %v1398
      %v1415 = vsub.f32 %v1348, %v1399
      %v1416 = vsub.f32 %v1349, %v1400
      %v1417 = vsub.f32 %v1350, %v1401
      %v1418 = vsub.f32 %v1351, %v1402
      %v1419 = vsub.f32 %v1352, %v1403
      %v1420 = vsub.f32 %v1353, %v1404
      %v1421 = vsub.f32 %v1354, %v1405
      %v1422 = vsub.f32 %v1355, %v1406
      %v1423 = vsub.f32 %v1356, %v1407
      %v1424 = vsub.f32 %v1357, %v1408
      %v1425 = vsub.f32 %v1358, %v1409
      %v1426 = vld [vmem:[#allocation5] sm:$0xff]
      %v1427 = vld [vmem:[#allocation5 + $0x8] sm:$0xff]
      %v1428 = vld [vmem:[#allocation5 + $0x10] sm:$0xff]
      %v1429 = vld [vmem:[#allocation5 + $0x18] sm:$0xff]
      %v1430 = vld [vmem:[#allocation5 + $0x20] sm:$0xff]
      %v1431 = vld [vmem:[#allocation5 + $0x28] sm:$0xff]
      %v1432 = vld [vmem:[#allocation5 + $0x30] sm:$0xff]
      %v1433 = vld [vmem:[#allocation5 + $0x38] sm:$0xff]
      %v1434 = vld [vmem:[#allocation5 + $0x40] sm:$0xff]
      %v1435 = vld [vmem:[#allocation5 + $0x48] sm:$0xff]
      %v1436 = vld [vmem:[#allocation5 + $0x50] sm:$0xff]
      %v1437 = vld [vmem:[#allocation5 + $0x58] sm:$0xff]
      %v1438 = vld [vmem:[#allocation5 + $0x60] sm:$0xff]
      %v1439 = vld [vmem:[#allocation5 + $0x68] sm:$0xff]
      %v1440 = vld [vmem:[#allocation5 + $0x70] sm:$0xff]
      %v1441 = vld [vmem:[#allocation5 + $0x78] sm:$0xff]
      %vm1442 = vcmp.eq.s32.totalorder %v1426, %v1378
      %vm1443 = vcmp.eq.s32.totalorder %v1427, %v1379
      %vm1444 = vcmp.eq.s32.totalorder %v1428, %v1380
      %vm1445 = vcmp.eq.s32.totalorder %v1429, %v1381
      %vm1446 = vcmp.eq.s32.totalorder %v1430, %v1382
      %vm1447 = vcmp.eq.s32.totalorder %v1431, %v1383
      %vm1448 = vcmp.eq.s32.totalorder %v1432, %v1384
      %vm1449 = vcmp.eq.s32.totalorder %v1433, %v1385
      %vm1450 = vcmp.eq.s32.totalorder %v1434, %v1386
      %vm1451 = vcmp.eq.s32.totalorder %v1435, %v1387
      %vm1452 = vcmp.eq.s32.totalorder %v1436, %v1388
      %vm1453 = vcmp.eq.s32.totalorder %v1437, %v1389
      %vm1454 = vcmp.eq.s32.totalorder %v1438, %v1390
      %vm1455 = vcmp.eq.s32.totalorder %v1439, %v1391
      %vm1456 = vcmp.eq.s32.totalorder %v1440, %v1392
      %vm1457 = vcmp.eq.s32.totalorder %v1441, %v1393
      %v1458 = vsel %vm1442, 1, 0
      %v1459 = vsel %vm1443, 1, 0
      %v1460 = vsel %vm1444, 1, 0
      %v1461 = vsel %vm1445, 1, 0
      %v1462 = vsel %vm1446, 1, 0
      %v1463 = vsel %vm1447, 1, 0
      %v1464 = vsel %vm1448, 1, 0
      %v1465 = vsel %vm1449, 1, 0
      %v1466 = vsel %vm1450, 1, 0
      %v1467 = vsel %vm1451, 1, 0
      %v1468 = vsel %vm1452, 1, 0
      %v1469 = vsel %vm1453, 1, 0
      %v1470 = vsel %vm1454, 1, 0
      %v1471 = vsel %vm1455, 1, 0
      %v1472 = vsel %vm1456, 1, 0
      %v1473 = vsel %vm1457, 1, 0
      %s1474 = sld [smem:[#allocation7]]
      %v1475 = vstv %s1474
      %vm1476 = vcmp.lt.s32.totalorder %v1378, %v1475
      %vm1477 = vcmp.lt.s32.totalorder %v1379, %v1475
      %vm1478 = vcmp.lt.s32.totalorder %v1380, %v1475
      %vm1479 = vcmp.lt.s32.totalorder %v1381, %v1475
      %vm1480 = vcmp.lt.s32.totalorder %v1382, %v1475
      %vm1481 = vcmp.lt.s32.totalorder %v1383, %v1475
      %vm1482 = vcmp.lt.s32.totalorder %v1384, %v1475
      %vm1483 = vcmp.lt.s32.totalorder %v1385, %v1475
      %vm1484 = vcmp.lt.s32.totalorder %v1386, %v1475
      %vm1485 = vcmp.lt.s32.totalorder %v1387, %v1475
      %vm1486 = vcmp.lt.s32.totalorder %v1388, %v1475
      %vm1487 = vcmp.lt.s32.totalorder %v1389, %v1475
      %vm1488 = vcmp.lt.s32.totalorder %v1390, %v1475
      %vm1489 = vcmp.lt.s32.totalorder %v1391, %v1475
      %vm1490 = vcmp.lt.s32.totalorder %v1392, %v1475
      %vm1491 = vcmp.lt.s32.totalorder %v1393, %v1475
      %v1492 = vsel %vm1476, %v1410, 0.0
      %v1493 = vsel %vm1477, %v1411, 0.0
      %v1494 = vsel %vm1478, %v1412, 0.0
      %v1495 = vsel %vm1479, %v1413, 0.0
      %v1496 = vsel %vm1480, %v1414, 0.0
      %v1497 = vsel %vm1481, %v1415, 0.0
      %v1498 = vsel %vm1482, %v1416, 0.0
      %v1499 = vsel %vm1483, %v1417, 0.0
      %v1500 = vsel %vm1484, %v1418, 0.0
      %v1501 = vsel %vm1485, %v1419, 0.0
      %v1502 = vsel %vm1486, %v1420, 0.0
      %v1503 = vsel %vm1487, %v1421, 0.0
      %v1504 = vsel %vm1488, %v1422, 0.0
      %v1505 = vsel %vm1489, %v1423, 0.0
      %v1506 = vsel %vm1490, %v1424, 0.0
      %v1507 = vsel %vm1491, %v1425, 0.0
      %v1508 = vsel %vm1476, %v1458, 0
      %v1509 = vsel %vm1477, %v1459, 0
      %v1510 = vsel %vm1478, %v1460, 0
      %v1511 = vsel %vm1479, %v1461, 0
      %v1512 = vsel %vm1480, %v1462, 0
      %v1513 = vsel %vm1481, %v1463, 0
      %v1514 = vsel %vm1482, %v1464, 0
      %v1515 = vsel %vm1483, %v1465, 0
      %v1516 = vsel %vm1484, %v1466, 0
      %v1517 = vsel %vm1485, %v1467, 0
      %v1518 = vsel %vm1486, %v1468, 0
      %v1519 = vsel %vm1487, %v1469, 0
      %v1520 = vsel %vm1488, %v1470, 0
      %v1521 = vsel %vm1489, %v1471, 0
      %v1522 = vsel %vm1490, %v1472, 0
      %v1523 = vsel %vm1491, %v1473, 0
      %1524 = vst.msk [vmem:[%s4] sm:$0xff] %vm907, %v1492
      %1525 = vst.msk [vmem:[%s4 + $0x8] sm:$0xff] %vm907, %v1493
      %1526 = vst.msk [vmem:[%s4 + $0x10] sm:$0xff] %vm907, %v1494
      %1527 = vst.msk [vmem:[%s4 + $0x18] sm:$0xff] %vm907, %v1495
      %1528 = vst.msk [vmem:[%s4 + $0x20] sm:$0xff] %vm907, %v1496
      %1529 = vst.msk [vmem:[%s4 + $0x28] sm:$0xff] %vm907, %v1497
      %1530 = vst.msk [vmem:[%s4 + $0x30] sm:$0xff] %vm907, %v1498
      %1531 = vst.msk [vmem:[%s4 + $0x38] sm:$0xff] %vm907, %v1499
      %1532 = vst.msk [vmem:[%s4 + $0x40] sm:$0xff] %vm907, %v1500
      %1533 = vst.msk [vmem:[%s4 + $0x48] sm:$0xff] %vm907, %v1501
      %1534 = vst.msk [vmem:[%s4 + $0x50] sm:$0xff] %vm907, %v1502
      %1535 = vst.msk [vmem:[%s4 + $0x58] sm:$0xff] %vm907, %v1503
      %1536 = vst.msk [vmem:[%s4 + $0x60] sm:$0xff] %vm907, %v1504
      %1537 = vst.msk [vmem:[%s4 + $0x68] sm:$0xff] %vm907, %v1505
      %1538 = vst.msk [vmem:[%s4 + $0x70] sm:$0xff] %vm907, %v1506
      %1539 = vst.msk [vmem:[%s4 + $0x78] sm:$0xff] %vm907, %v1507
      %1540 = vst.msk [vmem:[%s5] sm:$0xff] %vm907, %v1508
      %1541 = vst.msk [vmem:[%s5 + $0x8] sm:$0xff] %vm907, %v1509
      %1542 = vst.msk [vmem:[%s5 + $0x10] sm:$0xff] %vm907, %v1510
      %1543 = vst.msk [vmem:[%s5 + $0x18] sm:$0xff] %vm907, %v1511
      %1544 = vst.msk [vmem:[%s5 + $0x20] sm:$0xff] %vm907, %v1512
      %1545 = vst.msk [vmem:[%s5 + $0x28] sm:$0xff] %vm907, %v1513
      %1546 = vst.msk [vmem:[%s5 + $0x30] sm:$0xff] %vm907, %v1514
      %1547 = vst.msk [vmem:[%s5 + $0x38] sm:$0xff] %vm907, %v1515
      %1548 = vst.msk [vmem:[%s5 + $0x40] sm:$0xff] %vm907, %v1516
      %1549 = vst.msk [vmem:[%s5 + $0x48] sm:$0xff] %vm907, %v1517
      %1550 = vst.msk [vmem:[%s5 + $0x50] sm:$0xff] %vm907, %v1518
      %1551 = vst.msk [vmem:[%s5 + $0x58] sm:$0xff] %vm907, %v1519
      %1552 = vst.msk [vmem:[%s5 + $0x60] sm:$0xff] %vm907, %v1520
      %1553 = vst.msk [vmem:[%s5 + $0x68] sm:$0xff] %vm907, %v1521
      %1554 = vst.msk [vmem:[%s5 + $0x70] sm:$0xff] %vm907, %v1522
      %1555 = vst.msk [vmem:[%s5 + $0x78] sm:$0xff] %vm907, %v1523
    $region37: #{tpu_custom_call.1} parent=1 // pred_fallthru
      _
    // Predicated region
    $region38: #{tpu_custom_call.1} parent=1 // pred_check
      _
    $region39: #{tpu_custom_call.1} parent=1 // pred_check_branch
      %1557 = sbr.rel (0) target = $region41
    $region40: #{tpu_custom_call.1} parent=1 // pred_region
      _
    $region41: #{tpu_custom_call.1} parent=1 // pred_fallthru
      _
    // Predicated region
    $region42: #{tpu_custom_call.1} parent=1 // pred_check
      _
    $region43: #{tpu_custom_call.1} parent=1 // pred_check_branch
      %1559 = sbr.rel (0) target = $region45
    $region44: #{tpu_custom_call.1} parent=1 // pred_region
      _
    $region45: #{tpu_custom_call.1} parent=1 // pred_fallthru
      _
    // Predicated region
    $region46: #{tpu_custom_call.1} parent=1 // pred_check
      _
    $region47: #{tpu_custom_call.1} parent=1 // pred_check_branch
      %1561 = sbr.rel (0) target = $region49
    $region48: #{tpu_custom_call.1} parent=1 // pred_region
      _
    $region49: #{tpu_custom_call.1} parent=1 // pred_fallthru
      _
    // Predicated region
    $region50: #{tpu_custom_call.1} parent=1 // pred_check
      _
    $region51: #{tpu_custom_call.1} parent=1 // pred_check_branch
      %1563 = sbr.rel (0) target = $region53
    $region52: #{tpu_custom_call.1} parent=1 // pred_region
      _
    $region53: #{tpu_custom_call.1} parent=1 // pred_fallthru
      _
    %1564 = vsyncpa [#allocation9], 1
    %1565 = vsyncpa [#allocation11], 1

</llo_original>
